<compile_context>
chip_gen: v6e
topology: v6e:2x2x1
jax: 0.10.0
libtpu: 0.0.40
codegen_flags: <defaults>
</compile_context>

<pallas_src>
from functools import partial

import numpy as np
import jax
import jax.numpy as jnp
from jax.experimental import pallas as pl
from jax.experimental.pallas import tpu as pltpu


def _silutopsis_kernel(x_ref, e_ref, qkv_g_ref, qkv_b_ref, rect_w_ref,
                       rect_g_ref, rect_b_ref, out_ref,
                       *, g, d, scl, inv_tt, eps, bblk):
    # Loop-invariant loads (hoisted out of the per-batch loop).
    e = e_ref[...]                       # (N, HW) one-hot token membership, f32
    rect_w = rect_w_ref[...]             # (C, C) = W^T of the rect Linear
    q_g, q_b = qkv_g_ref[0], qkv_b_ref[0]
    k_g, k_b = qkv_g_ref[1], qkv_b_ref[1]
    v_g, v_b = qkv_g_ref[2], qkv_b_ref[2]
    r_g, r_b = rect_g_ref[0], rect_b_ref[0]

    def layernorm(z, gamma, beta):       # z: (N, C), LN over channels (last axis)
        mu = jnp.mean(z, axis=-1, keepdims=True)
        zc = z - mu
        var = jnp.mean(zc * zc, axis=-1, keepdims=True)
        return zc * jax.lax.rsqrt(var + eps) * gamma + beta

    for b in range(bblk):
        xb = x_ref[b].astype(jnp.float32)                       # (C, HW)

        # AvgPool2d(T) + flatten(2) + transpose(1,2), fused into one matmul:
        # box[n, c] = (1/T^2) * sum_hw E[n, hw] * x[c, hw]      -> (N, C)
        box = jax.lax.dot_general(
            e, xb, (((1,), (1,)), ((), ())),
            preferred_element_type=jnp.float32) * inv_tt

        q = layernorm(box, q_g, q_b)
        k = layernorm(box, k_g, k_b)
        v = layernorm(box, v_g, v_b)

        # Grouped attention over the N tokens.  The rect Linear is folded into
        # the group loop (accumulating sg @ W^T[rows of group]) so no
        # concatenate over groups is needed.
        shift = None
        for gi in range(g):
            sl = slice(gi * d, (gi + 1) * d)
            qg, kg, vg = q[:, sl], k[:, sl], v[:, sl]
            sim = scl * jax.lax.dot_general(                     # (N, N), no k^T
                qg, kg, (((1,), (1,)), ((), ())),
                preferred_element_type=jnp.float32)
            sim = sim - jnp.max(sim, axis=-1, keepdims=True)
            p = jnp.exp(sim)
            p = p * pl.reciprocal(jnp.sum(p, axis=-1, keepdims=True), approx=True)
            sg = jnp.dot(p, vg, preferred_element_type=jnp.float32)        # (N, d)
            contrib = jnp.dot(sg, rect_w[sl, :],
                              preferred_element_type=jnp.float32)          # (N, C)
            shift = contrib if shift is None else shift + contrib

        shift = layernorm(shift, r_g, r_b)                                  # (N, C)

        # Broadcast each token's shift over its T*T pixels: (C, HW)
        shift_cf = jnp.dot(shift.T, e, preferred_element_type=jnp.float32)
        out_ref[b] = (xb * jax.nn.sigmoid(shift_cf + xb)).astype(out_ref.dtype)


def _token_membership(part, T):
    """One-hot matrix E (N, H*W): E[n, hw] = 1 iff pixel hw belongs to token n."""
    W = part * T
    hw = np.arange(W * W)
    tok = (hw // W // T) * part + (hw % W) // T
    E = (tok[None, :] == np.arange(part * part)[:, None]).astype(np.float32)
    return jnp.asarray(E)


def silutopsis_forward(x, params, *, part=7):
    b, c, h, w = x.shape
    T = h // part
    assert h == part * T and w == part * T, "spatial dims must be part*T"
    N = part * part
    HW = h * w
    g = max(c // 32, 1)
    d = c // g
    assert g * d == c, "channels must split evenly into groups"
    scl = float(d) ** (-0.5)
    inv_tt = 1.0 / float(T * T)

    # Batch-block size: largest divisor of b in {8,4,2} that still leaves >= 2
    # grid steps (amortizes ~0.35us/step overhead, keeps both v7x cores busy).
    bblk = 1
    for cand in (8, 4, 2):
        if b % cand == 0 and b // cand >= 2:
            bblk = cand
            break

    x2 = x.reshape(b, c, HW)                       # free reshape, native layout
    E = _token_membership(part, T)

    kernel = partial(_silutopsis_kernel, g=g, d=d, scl=scl,
                     inv_tt=inv_tt, eps=1e-6, bblk=bblk)
    out = pl.pallas_call(
        kernel,
        out_shape=jax.ShapeDtypeStruct((b, c, HW), x.dtype),
        grid=(b // bblk,),
        in_specs=[
            pl.BlockSpec((bblk, c, HW), lambda i: (i, 0, 0)),   # x, blocked on batch
            pl.BlockSpec((N, HW), lambda i: (0, 0)),            # E, resident
            pl.BlockSpec((3, c), lambda i: (0, 0)),             # qkv gammas
            pl.BlockSpec((3, c), lambda i: (0, 0)),             # qkv betas
            pl.BlockSpec((c, c), lambda i: (0, 0)),             # rect W^T
            pl.BlockSpec((1, c), lambda i: (0, 0)),             # rect gamma
            pl.BlockSpec((1, c), lambda i: (0, 0)),             # rect beta
        ],
        out_specs=pl.BlockSpec((bblk, c, HW), lambda i: (i, 0, 0)),
        compiler_params=pltpu.CompilerParams(
            dimension_semantics=("parallel",),
            vmem_limit_bytes=32 * 1024 * 1024,
        ),
    )(x2, E,
      params["qkv_gamma"].astype(jnp.float32),
      params["qkv_beta"].astype(jnp.float32),
      params["rect_w_t"].astype(jnp.float32),
      params["rect_gamma"].astype(jnp.float32),
      params["rect_beta"].astype(jnp.float32))

    return out.reshape(b, c, h, w)


def reference_forward(x, params, part=7):
    """Pure-JAX mirror of the PyTorch forward, for correctness checking."""
    b, c, h, w = x.shape
    T = h // part
    N = part * part
    g = max(c // 32, 1)
    d = c // g
    scl = float(d) ** (-0.5)

    x6 = x.reshape(b, c, part, T, part, T)
    box = jnp.mean(x6, axis=(3, 5)).reshape(b, c, N).transpose(0, 2, 1)

    def ln(z, gamma, beta):
        mu = jnp.mean(z, -1, keepdims=True)
        var = jnp.mean((z - mu) ** 2, -1, keepdims=True)
        return (z - mu) / jnp.sqrt(var + 1e-6) * gamma + beta

    q = ln(box, params["qkv_gamma"][0], params["qkv_beta"][0]).reshape(b, N, g, d).transpose(0, 2, 1, 3)
    k = ln(box, params["qkv_gamma"][1], params["qkv_beta"][1]).reshape(b, N, g, d).transpose(0, 2, 1, 3)
    v = ln(box, params["qkv_gamma"][2], params["qkv_beta"][2]).reshape(b, N, g, d).transpose(0, 2, 1, 3)
    sim = jax.nn.softmax(scl * jnp.einsum("bgnd,bgmd->bgnm", q, k), axis=-1)
    shift = jnp.einsum("bgnm,bgmd->bgnd", sim, v).transpose(0, 2, 1, 3).reshape(b, N, c)
    shift = ln(shift @ params["rect_w_t"], params["rect_gamma"][0], params["rect_beta"][0])
    shift = shift.transpose(0, 2, 1).reshape(b, c, part, 1, part, 1)
    out = x6 * jax.nn.sigmoid(shift + x6)
    return out.reshape(b, c, h, w)


if __name__ == "__main__":
    key = jax.random.PRNGKey(0)
    b, c = 2, 64            # dim=64 -> g = dim//32 = 2 groups of d = 32 channels
    part, T = 7, 2          # spatial = part*T = 14
    h = w = part * T

    kx, kw = jax.random.split(key)
    x = jax.random.normal(kx, (b, c, h, w), jnp.float32)

    # Deterministic parameter init matching the module's __init__:
    #   q/k/v LayerNorm: weight=1, bias=0
    #   rect Linear (no bias): trunc_normal std=0.02; rect LayerNorm: weight=1, bias=0
    rect_w = 0.02 * jax.random.truncated_normal(kw, -2.0, 2.0, (c, c), jnp.float32)
    params = {
        "qkv_gamma": jnp.ones((3, c), jnp.float32),
        "qkv_beta": jnp.zeros((3, c), jnp.float32),
        "rect_w_t": rect_w.T,   # pass transposed so the kernel does y = x @ W^T
        "rect_gamma": jnp.ones((1, c), jnp.float32),
        "rect_beta": jnp.zeros((1, c), jnp.float32),
    }

    y = jax.block_until_ready(silutopsis_forward(x, params, part=part))
    y_ref = reference_forward(x, params, part=part)

    assert y.shape == x.shape and y.dtype == x.dtype
    # approx reciprocal in the softmax denominator -> slightly looser tolerance
    assert np.allclose(np.asarray(y), np.asarray(y_ref), atol=2e-3, rtol=2e-3)
    print("KERNEL_OK")
</pallas_src>

<mosaic_0001>
module attributes {stable_mosaic.version = 11 : i64} {
  func.func @_silutopsis_kernel(%arg0: i32, %arg1: memref<1x64x196xf32, #tpu.memory_space<vmem>>, %arg2: memref<49x196xf32, #tpu.memory_space<vmem>>, %arg3: memref<3x64xf32, #tpu.memory_space<vmem>>, %arg4: memref<3x64xf32, #tpu.memory_space<vmem>>, %arg5: memref<64x64xf32, #tpu.memory_space<vmem>>, %arg6: memref<1x64xf32, #tpu.memory_space<vmem>>, %arg7: memref<1x64xf32, #tpu.memory_space<vmem>>, %arg8: memref<1x64x196xf32, #tpu.memory_space<vmem>>) attributes {dimension_semantics = [#tpu.dimension_semantics<parallel>], iteration_bounds = array<i64: 2>, scalar_prefetch = 0 : i64, scratch_operands = 0 : i64, tpu.core_type = #tpu.core_type<tc>, window_params = [{transform_indices = @transform_0, window_bounds = array<i64: 1, 64, 196>}, {pipeline_mode = #tpu.pipeline_mode<synchronous>, transform_indices = @transform_1, window_bounds = array<i64: 49, 196>}, {pipeline_mode = #tpu.pipeline_mode<synchronous>, transform_indices = @transform_2, window_bounds = array<i64: 3, 64>}, {pipeline_mode = #tpu.pipeline_mode<synchronous>, transform_indices = @transform_3, window_bounds = array<i64: 3, 64>}, {pipeline_mode = #tpu.pipeline_mode<synchronous>, transform_indices = @transform_4, window_bounds = array<i64: 64, 64>}, {pipeline_mode = #tpu.pipeline_mode<synchronous>, transform_indices = @transform_5, window_bounds = array<i64: 1, 64>}, {pipeline_mode = #tpu.pipeline_mode<synchronous>, transform_indices = @transform_6, window_bounds = array<i64: 1, 64>}, {transform_indices = @transform_7, window_bounds = array<i64: 1, 64, 196>}]} {
    %c0 = arith.constant 0 : index
    %c0_0 = arith.constant 0 : index
    %0 = vector.load %arg2[%c0, %c0_0] : memref<49x196xf32, #tpu.memory_space<vmem>>, vector<49x196xf32>
    %c0_1 = arith.constant 0 : index
    %c0_2 = arith.constant 0 : index
    %1 = vector.load %arg5[%c0_1, %c0_2] : memref<64x64xf32, #tpu.memory_space<vmem>>, vector<64x64xf32>
    %c0_3 = arith.constant 0 : index
    %c0_4 = arith.constant 0 : index
    %2 = vector.load %arg3[%c0_3, %c0_4] : memref<3x64xf32, #tpu.memory_space<vmem>>, vector<1x64xf32>
    %3 = vector.shape_cast %2 : vector<1x64xf32> to vector<64xf32>
    %c0_5 = arith.constant 0 : index
    %c0_6 = arith.constant 0 : index
    %4 = vector.load %arg4[%c0_5, %c0_6] : memref<3x64xf32, #tpu.memory_space<vmem>>, vector<1x64xf32>
    %5 = vector.shape_cast %4 : vector<1x64xf32> to vector<64xf32>
    %c1 = arith.constant 1 : index
    %c0_7 = arith.constant 0 : index
    %6 = vector.load %arg3[%c1, %c0_7] : memref<3x64xf32, #tpu.memory_space<vmem>>, vector<1x64xf32>
    %7 = vector.shape_cast %6 : vector<1x64xf32> to vector<64xf32>
    %c1_8 = arith.constant 1 : index
    %c0_9 = arith.constant 0 : index
    %8 = vector.load %arg4[%c1_8, %c0_9] : memref<3x64xf32, #tpu.memory_space<vmem>>, vector<1x64xf32>
    %9 = vector.shape_cast %8 : vector<1x64xf32> to vector<64xf32>
    %c2 = arith.constant 2 : index
    %c0_10 = arith.constant 0 : index
    %10 = vector.load %arg3[%c2, %c0_10] : memref<3x64xf32, #tpu.memory_space<vmem>>, vector<1x64xf32>
    %11 = vector.shape_cast %10 : vector<1x64xf32> to vector<64xf32>
    %c2_11 = arith.constant 2 : index
    %c0_12 = arith.constant 0 : index
    %12 = vector.load %arg4[%c2_11, %c0_12] : memref<3x64xf32, #tpu.memory_space<vmem>>, vector<1x64xf32>
    %13 = vector.shape_cast %12 : vector<1x64xf32> to vector<64xf32>
    %c0_13 = arith.constant 0 : index
    %c0_14 = arith.constant 0 : index
    %14 = vector.load %arg6[%c0_13, %c0_14] : memref<1x64xf32, #tpu.memory_space<vmem>>, vector<1x64xf32>
    %15 = vector.shape_cast %14 : vector<1x64xf32> to vector<64xf32>
    %c0_15 = arith.constant 0 : index
    %c0_16 = arith.constant 0 : index
    %16 = vector.load %arg7[%c0_15, %c0_16] : memref<1x64xf32, #tpu.memory_space<vmem>>, vector<1x64xf32>
    %17 = vector.shape_cast %16 : vector<1x64xf32> to vector<64xf32>
    %c0_17 = arith.constant 0 : index
    %c0_18 = arith.constant 0 : index
    %c0_19 = arith.constant 0 : index
    %18 = vector.load %arg1[%c0_17, %c0_18, %c0_19] : memref<1x64x196xf32, #tpu.memory_space<vmem>>, vector<1x64x196xf32>
    %19 = vector.shape_cast %18 : vector<1x64x196xf32> to vector<64x196xf32>
    %cst = arith.constant dense<0.000000e+00> : vector<49x64xf32>
    %20 = tpu.matmul %0, %19, %cst {dimension_numbers = #tpu.dot_dimension_numbers<[1], [1], [0], [0], [0, 0, 1, 0], [], []>} : vector<49x196xf32>, vector<64x196xf32>, vector<49x64xf32> -> vector<49x64xf32>
    %cst_20 = arith.constant 2.500000e-01 : f32
    %21 = vector.broadcast %cst_20 : f32 to vector<49x64xf32>
    %22 = arith.mulf %20, %21 : vector<49x64xf32>
    %cst_21 = arith.constant dense<0.000000e+00> : vector<49xf32>
    %23 = vector.multi_reduction <add>, %22, %cst_21 [1] : vector<49x64xf32> to vector<49xf32>
    %24 = vector.shape_cast %23 : vector<49xf32> to vector<49x1xf32>
    %cst_22 = arith.constant 6.400000e+01 : f32
    %25 = vector.broadcast %cst_22 : f32 to vector<49x1xf32>
    %26 = arith.divf %24, %25 : vector<49x1xf32>
    %27 = vector.broadcast %26 : vector<49x1xf32> to vector<49x64xf32>
    %28 = arith.subf %22, %27 : vector<49x64xf32>
    %29 = arith.mulf %28, %28 : vector<49x64xf32>
    %cst_23 = arith.constant dense<0.000000e+00> : vector<49xf32>
    %30 = vector.multi_reduction <add>, %29, %cst_23 [1] : vector<49x64xf32> to vector<49xf32>
    %31 = vector.shape_cast %30 : vector<49xf32> to vector<49x1xf32>
    %cst_24 = arith.constant 6.400000e+01 : f32
    %32 = vector.broadcast %cst_24 : f32 to vector<49x1xf32>
    %33 = arith.divf %31, %32 : vector<49x1xf32>
    %cst_25 = arith.constant 9.99999997E-7 : f32
    %34 = vector.broadcast %cst_25 : f32 to vector<49x1xf32>
    %35 = arith.addf %33, %34 : vector<49x1xf32>
    %36 = math.rsqrt %35 : vector<49x1xf32>
    %37 = vector.broadcast %36 : vector<49x1xf32> to vector<49x64xf32>
    %38 = arith.mulf %28, %37 : vector<49x64xf32>
    %39 = vector.shape_cast %3 : vector<64xf32> to vector<1x64xf32>
    %40 = vector.broadcast %39 : vector<1x64xf32> to vector<49x64xf32>
    %41 = arith.mulf %38, %40 : vector<49x64xf32>
    %42 = vector.shape_cast %5 : vector<64xf32> to vector<1x64xf32>
    %43 = vector.broadcast %42 : vector<1x64xf32> to vector<49x64xf32>
    %44 = arith.addf %41, %43 : vector<49x64xf32>
    %cst_26 = arith.constant dense<0.000000e+00> : vector<49xf32>
    %45 = vector.multi_reduction <add>, %22, %cst_26 [1] : vector<49x64xf32> to vector<49xf32>
    %46 = vector.shape_cast %45 : vector<49xf32> to vector<49x1xf32>
    %cst_27 = arith.constant 6.400000e+01 : f32
    %47 = vector.broadcast %cst_27 : f32 to vector<49x1xf32>
    %48 = arith.divf %46, %47 : vector<49x1xf32>
    %49 = vector.broadcast %48 : vector<49x1xf32> to vector<49x64xf32>
    %50 = arith.subf %22, %49 : vector<49x64xf32>
    %51 = arith.mulf %50, %50 : vector<49x64xf32>
    %cst_28 = arith.constant dense<0.000000e+00> : vector<49xf32>
    %52 = vector.multi_reduction <add>, %51, %cst_28 [1] : vector<49x64xf32> to vector<49xf32>
    %53 = vector.shape_cast %52 : vector<49xf32> to vector<49x1xf32>
    %cst_29 = arith.constant 6.400000e+01 : f32
    %54 = vector.broadcast %cst_29 : f32 to vector<49x1xf32>
    %55 = arith.divf %53, %54 : vector<49x1xf32>
    %cst_30 = arith.constant 9.99999997E-7 : f32
    %56 = vector.broadcast %cst_30 : f32 to vector<49x1xf32>
    %57 = arith.addf %55, %56 : vector<49x1xf32>
    %58 = math.rsqrt %57 : vector<49x1xf32>
    %59 = vector.broadcast %58 : vector<49x1xf32> to vector<49x64xf32>
    %60 = arith.mulf %50, %59 : vector<49x64xf32>
    %61 = vector.shape_cast %7 : vector<64xf32> to vector<1x64xf32>
    %62 = vector.broadcast %61 : vector<1x64xf32> to vector<49x64xf32>
    %63 = arith.mulf %60, %62 : vector<49x64xf32>
    %64 = vector.shape_cast %9 : vector<64xf32> to vector<1x64xf32>
    %65 = vector.broadcast %64 : vector<1x64xf32> to vector<49x64xf32>
    %66 = arith.addf %63, %65 : vector<49x64xf32>
    %cst_31 = arith.constant dense<0.000000e+00> : vector<49xf32>
    %67 = vector.multi_reduction <add>, %22, %cst_31 [1] : vector<49x64xf32> to vector<49xf32>
    %68 = vector.shape_cast %67 : vector<49xf32> to vector<49x1xf32>
    %cst_32 = arith.constant 6.400000e+01 : f32
    %69 = vector.broadcast %cst_32 : f32 to vector<49x1xf32>
    %70 = arith.divf %68, %69 : vector<49x1xf32>
    %71 = vector.broadcast %70 : vector<49x1xf32> to vector<49x64xf32>
    %72 = arith.subf %22, %71 : vector<49x64xf32>
    %73 = arith.mulf %72, %72 : vector<49x64xf32>
    %cst_33 = arith.constant dense<0.000000e+00> : vector<49xf32>
    %74 = vector.multi_reduction <add>, %73, %cst_33 [1] : vector<49x64xf32> to vector<49xf32>
    %75 = vector.shape_cast %74 : vector<49xf32> to vector<49x1xf32>
    %cst_34 = arith.constant 6.400000e+01 : f32
    %76 = vector.broadcast %cst_34 : f32 to vector<49x1xf32>
    %77 = arith.divf %75, %76 : vector<49x1xf32>
    %cst_35 = arith.constant 9.99999997E-7 : f32
    %78 = vector.broadcast %cst_35 : f32 to vector<49x1xf32>
    %79 = arith.addf %77, %78 : vector<49x1xf32>
    %80 = math.rsqrt %79 : vector<49x1xf32>
    %81 = vector.broadcast %80 : vector<49x1xf32> to vector<49x64xf32>
    %82 = arith.mulf %72, %81 : vector<49x64xf32>
    %83 = vector.shape_cast %11 : vector<64xf32> to vector<1x64xf32>
    %84 = vector.broadcast %83 : vector<1x64xf32> to vector<49x64xf32>
    %85 = arith.mulf %82, %84 : vector<49x64xf32>
    %86 = vector.shape_cast %13 : vector<64xf32> to vector<1x64xf32>
    %87 = vector.broadcast %86 : vector<1x64xf32> to vector<49x64xf32>
    %88 = arith.addf %85, %87 : vector<49x64xf32>
    %89 = vector.extract_strided_slice %44 {offsets = [0, 0], sizes = [49, 32], strides = [1, 1]} : vector<49x64xf32> to vector<49x32xf32>
    %90 = vector.extract_strided_slice %66 {offsets = [0, 0], sizes = [49, 32], strides = [1, 1]} : vector<49x64xf32> to vector<49x32xf32>
    %91 = vector.extract_strided_slice %88 {offsets = [0, 0], sizes = [49, 32], strides = [1, 1]} : vector<49x64xf32> to vector<49x32xf32>
    %cst_36 = arith.constant dense<0.000000e+00> : vector<49x49xf32>
    %92 = tpu.matmul %89, %90, %cst_36 {dimension_numbers = #tpu.dot_dimension_numbers<[1], [1], [0], [0], [0, 0, 1, 0], [], []>} : vector<49x32xf32>, vector<49x32xf32>, vector<49x49xf32> -> vector<49x49xf32>
    %cst_37 = arith.constant 0.176776692 : f32
    %93 = vector.broadcast %cst_37 : f32 to vector<49x49xf32>
    %94 = arith.mulf %93, %92 : vector<49x49xf32>
    %cst_38 = arith.constant dense<0xFF800000> : vector<49xf32>
    %95 = vector.multi_reduction <maximumf>, %94, %cst_38 [1] : vector<49x49xf32> to vector<49xf32>
    %96 = vector.shape_cast %95 : vector<49xf32> to vector<49x1xf32>
    %97 = vector.broadcast %96 : vector<49x1xf32> to vector<49x49xf32>
    %98 = arith.subf %94, %97 : vector<49x49xf32>
    %99 = math.exp %98 : vector<49x49xf32>
    %cst_39 = arith.constant dense<0.000000e+00> : vector<49xf32>
    %100 = vector.multi_reduction <add>, %99, %cst_39 [1] : vector<49x49xf32> to vector<49xf32>
    %101 = vector.shape_cast %100 : vector<49xf32> to vector<49x1xf32>
    %102 = tpu.reciprocal %101 {approx = true} : vector<49x1xf32> -> vector<49x1xf32>
    %103 = vector.broadcast %102 : vector<49x1xf32> to vector<49x49xf32>
    %104 = arith.mulf %99, %103 : vector<49x49xf32>
    %cst_40 = arith.constant dense<0.000000e+00> : vector<49x32xf32>
    %105 = tpu.matmul %104, %91, %cst_40 {dimension_numbers = #tpu.dot_dimension_numbers<[1], [0], [0], [1], [0, 0, 1, 1], [], []>} : vector<49x49xf32>, vector<49x32xf32>, vector<49x32xf32> -> vector<49x32xf32>
    %106 = vector.extract_strided_slice %1 {offsets = [0, 0], sizes = [32, 64], strides = [1, 1]} : vector<64x64xf32> to vector<32x64xf32>
    %cst_41 = arith.constant dense<0.000000e+00> : vector<49x64xf32>
    %107 = tpu.matmul %105, %106, %cst_41 {dimension_numbers = #tpu.dot_dimension_numbers<[1], [0], [0], [1], [0, 0, 1, 1], [], []>} : vector<49x32xf32>, vector<32x64xf32>, vector<49x64xf32> -> vector<49x64xf32>
    %108 = vector.extract_strided_slice %44 {offsets = [0, 32], sizes = [49, 32], strides = [1, 1]} : vector<49x64xf32> to vector<49x32xf32>
    %109 = vector.extract_strided_slice %66 {offsets = [0, 32], sizes = [49, 32], strides = [1, 1]} : vector<49x64xf32> to vector<49x32xf32>
    %110 = vector.extract_strided_slice %88 {offsets = [0, 32], sizes = [49, 32], strides = [1, 1]} : vector<49x64xf32> to vector<49x32xf32>
    %cst_42 = arith.constant dense<0.000000e+00> : vector<49x49xf32>
    %111 = tpu.matmul %108, %109, %cst_42 {dimension_numbers = #tpu.dot_dimension_numbers<[1], [1], [0], [0], [0, 0, 1, 0], [], []>} : vector<49x32xf32>, vector<49x32xf32>, vector<49x49xf32> -> vector<49x49xf32>
    %cst_43 = arith.constant 0.176776692 : f32
    %112 = vector.broadcast %cst_43 : f32 to vector<49x49xf32>
    %113 = arith.mulf %112, %111 : vector<49x49xf32>
    %cst_44 = arith.constant dense<0xFF800000> : vector<49xf32>
    %114 = vector.multi_reduction <maximumf>, %113, %cst_44 [1] : vector<49x49xf32> to vector<49xf32>
    %115 = vector.shape_cast %114 : vector<49xf32> to vector<49x1xf32>
    %116 = vector.broadcast %115 : vector<49x1xf32> to vector<49x49xf32>
    %117 = arith.subf %113, %116 : vector<49x49xf32>
    %118 = math.exp %117 : vector<49x49xf32>
    %cst_45 = arith.constant dense<0.000000e+00> : vector<49xf32>
    %119 = vector.multi_reduction <add>, %118, %cst_45 [1] : vector<49x49xf32> to vector<49xf32>
    %120 = vector.shape_cast %119 : vector<49xf32> to vector<49x1xf32>
    %121 = tpu.reciprocal %120 {approx = true} : vector<49x1xf32> -> vector<49x1xf32>
    %122 = vector.broadcast %121 : vector<49x1xf32> to vector<49x49xf32>
    %123 = arith.mulf %118, %122 : vector<49x49xf32>
    %cst_46 = arith.constant dense<0.000000e+00> : vector<49x32xf32>
    %124 = tpu.matmul %123, %110, %cst_46 {dimension_numbers = #tpu.dot_dimension_numbers<[1], [0], [0], [1], [0, 0, 1, 1], [], []>} : vector<49x49xf32>, vector<49x32xf32>, vector<49x32xf32> -> vector<49x32xf32>
    %125 = vector.extract_strided_slice %1 {offsets = [32, 0], sizes = [32, 64], strides = [1, 1]} : vector<64x64xf32> to vector<32x64xf32>
    %cst_47 = arith.constant dense<0.000000e+00> : vector<49x64xf32>
    %126 = tpu.matmul %124, %125, %cst_47 {dimension_numbers = #tpu.dot_dimension_numbers<[1], [0], [0], [1], [0, 0, 1, 1], [], []>} : vector<49x32xf32>, vector<32x64xf32>, vector<49x64xf32> -> vector<49x64xf32>
    %127 = arith.addf %107, %126 : vector<49x64xf32>
    %cst_48 = arith.constant dense<0.000000e+00> : vector<49xf32>
    %128 = vector.multi_reduction <add>, %127, %cst_48 [1] : vector<49x64xf32> to vector<49xf32>
    %129 = vector.shape_cast %128 : vector<49xf32> to vector<49x1xf32>
    %cst_49 = arith.constant 6.400000e+01 : f32
    %130 = vector.broadcast %cst_49 : f32 to vector<49x1xf32>
    %131 = arith.divf %129, %130 : vector<49x1xf32>
    %132 = vector.broadcast %131 : vector<49x1xf32> to vector<49x64xf32>
    %133 = arith.subf %127, %132 : vector<49x64xf32>
    %134 = arith.mulf %133, %133 : vector<49x64xf32>
    %cst_50 = arith.constant dense<0.000000e+00> : vector<49xf32>
    %135 = vector.multi_reduction <add>, %134, %cst_50 [1] : vector<49x64xf32> to vector<49xf32>
    %136 = vector.shape_cast %135 : vector<49xf32> to vector<49x1xf32>
    %cst_51 = arith.constant 6.400000e+01 : f32
    %137 = vector.broadcast %cst_51 : f32 to vector<49x1xf32>
    %138 = arith.divf %136, %137 : vector<49x1xf32>
    %cst_52 = arith.constant 9.99999997E-7 : f32
    %139 = vector.broadcast %cst_52 : f32 to vector<49x1xf32>
    %140 = arith.addf %138, %139 : vector<49x1xf32>
    %141 = math.rsqrt %140 : vector<49x1xf32>
    %142 = vector.broadcast %141 : vector<49x1xf32> to vector<49x64xf32>
    %143 = arith.mulf %133, %142 : vector<49x64xf32>
    %144 = vector.shape_cast %15 : vector<64xf32> to vector<1x64xf32>
    %145 = vector.broadcast %144 : vector<1x64xf32> to vector<49x64xf32>
    %146 = arith.mulf %143, %145 : vector<49x64xf32>
    %147 = vector.shape_cast %17 : vector<64xf32> to vector<1x64xf32>
    %148 = vector.broadcast %147 : vector<1x64xf32> to vector<49x64xf32>
    %149 = arith.addf %146, %148 : vector<49x64xf32>
    %150 = tpu.transpose %149, [1, 0] : vector<49x64xf32> -> vector<64x49xf32>
    %cst_53 = arith.constant dense<0.000000e+00> : vector<64x196xf32>
    %151 = tpu.matmul %150, %0, %cst_53 {dimension_numbers = #tpu.dot_dimension_numbers<[1], [0], [0], [1], [0, 0, 1, 1], [], []>} : vector<64x49xf32>, vector<49x196xf32>, vector<64x196xf32> -> vector<64x196xf32>
    %152 = arith.addf %151, %19 : vector<64x196xf32>
    %153 = arith.negf %152 : vector<64x196xf32>
    %154 = math.exp %153 : vector<64x196xf32>
    %cst_54 = arith.constant 1.000000e+00 : f32
    %155 = vector.broadcast %cst_54 : f32 to vector<64x196xf32>
    %156 = arith.addf %155, %154 : vector<64x196xf32>
    %157 = arith.divf %155, %156 : vector<64x196xf32>
    %158 = arith.mulf %19, %157 : vector<64x196xf32>
    %c0_55 = arith.constant 0 : index
    %c0_56 = arith.constant 0 : index
    %c0_57 = arith.constant 0 : index
    %159 = vector.load %arg8[%c0_55, %c0_56, %c0_57] : memref<1x64x196xf32, #tpu.memory_space<vmem>>, vector<1x64x196xf32>
    %160 = vector.shape_cast %159 : vector<1x64x196xf32> to vector<64x196xf32>
    %161 = vector.shape_cast %158 : vector<64x196xf32> to vector<1x64x196xf32>
    tpu.vector_store %arg8[%c0_55, %c0_56, %c0_57], %161 {strides = array<i32>} : memref<1x64x196xf32, #tpu.memory_space<vmem>>, vector<1x64x196xf32>,
    return
  }
  func.func @transform_0(%arg0: i32) -> (i32, i32, i32) {
    %c0_i32 = arith.constant 0 : i32
    %c0_i32_0 = arith.constant 0 : i32
    %c0_i32_1 = arith.constant 0 : i32
    return %arg0, %c0_i32, %c0_i32_0 : i32, i32, i32
  }
  func.func @transform_1(%arg0: i32) -> (i32, i32) {
    %c0_i32 = arith.constant 0 : i32
    %c0_i32_0 = arith.constant 0 : i32
    %c0_i32_1 = arith.constant 0 : i32
    return %c0_i32, %c0_i32_0 : i32, i32
  }
  func.func @transform_2(%arg0: i32) -> (i32, i32) {
    %c0_i32 = arith.constant 0 : i32
    %c0_i32_0 = arith.constant 0 : i32
    %c0_i32_1 = arith.constant 0 : i32
    return %c0_i32, %c0_i32_0 : i32, i32
  }
  func.func @transform_3(%arg0: i32) -> (i32, i32) {
    %c0_i32 = arith.constant 0 : i32
    %c0_i32_0 = arith.constant 0 : i32
    %c0_i32_1 = arith.constant 0 : i32
    return %c0_i32, %c0_i32_0 : i32, i32
  }
  func.func @transform_4(%arg0: i32) -> (i32, i32) {
    %c0_i32 = arith.constant 0 : i32
    %c0_i32_0 = arith.constant 0 : i32
    %c0_i32_1 = arith.constant 0 : i32
    return %c0_i32, %c0_i32_0 : i32, i32
  }
  func.func @transform_5(%arg0: i32) -> (i32, i32) {
    %c0_i32 = arith.constant 0 : i32
    %c0_i32_0 = arith.constant 0 : i32
    %c0_i32_1 = arith.constant 0 : i32
    return %c0_i32, %c0_i32_0 : i32, i32
  }
  func.func @transform_6(%arg0: i32) -> (i32, i32) {
    %c0_i32 = arith.constant 0 : i32
    %c0_i32_0 = arith.constant 0 : i32
    %c0_i32_1 = arith.constant 0 : i32
    return %c0_i32, %c0_i32_0 : i32, i32
  }
  func.func @transform_7(%arg0: i32) -> (i32, i32, i32) {
    %c0_i32 = arith.constant 0 : i32
    %c0_i32_0 = arith.constant 0 : i32
    %c0_i32_1 = arith.constant 0 : i32
    return %arg0, %c0_i32, %c0_i32_0 : i32, i32, i32
  }
}

</mosaic_0001>

<llo_original>
// kernel: tpu_custom_call.1
$region0: #{tpu_custom_call.1}
  #allocation0 [shape = 'u32[]', space=smem, size = 0x4, offset = 0x4, fixed_abs, tag = 'smem constant byte address 0x4 - core index']
  #allocation1 [shape = 'u32[144,128]{1,0:T(1,128)}', space=vmem, size = 0x12000, scoped, tag = 'internal scratch']
  %s0 = inlined_call_operand.hbm [shape: f32[2,64,196], index: 0, kind: input, shape index: {}]
  %s1 = inlined_call_operand.hbm [shape: f32[49,196], index: 1, kind: input, shape index: {}]
  %s2 = inlined_call_operand.hbm [shape: f32[3,64], index: 2, kind: input, shape index: {}]
  %s3 = inlined_call_operand.vmem [shape: f32[3,64], index: 3, kind: input, shape index: {}]
  %s4 = inlined_call_operand.hbm [shape: f32[64,64], index: 4, kind: input, shape index: {}]
  %s5 = inlined_call_operand.vmem [shape: f32[1,64], index: 5, kind: input, shape index: {}]
  %s6 = inlined_call_operand.vmem [shape: f32[1,64], index: 6, kind: input, shape index: {}]
  %s7 = inlined_call_operand.hbm [shape: f32[2,64,196], index: 7, kind: output, shape index: {}]
  %s8 = sld [smem:[#allocation0]]
  $region77: #{tpu_custom_call.1} parent=0
    _
  %s10 = ssub.s32 1, %s8
  %s11 = scalar_select 0, %s10, %s8
  $region1: #{tpu_custom_call.1} parent=0
    #allocation2 [shape = 'u8[131072]{0}', space=vmem, size = 0x20000, scoped, tag = 'input window, operand 0']
    #allocation3 [shape = 's32[2]{0}', space=sflag, size = 0x8, scoped, tag = 'scoped memory for tpu_custom_call.1']
    #allocation4 [shape = 's32[2]{0}', space=sflag, size = 0x8, scoped, tag = 'scoped memory for tpu_custom_call.1']
    #allocation5 [shape = 'u8[57344]{0}', space=vmem, size = 0xe000, scoped, tag = 'input window, operand 1, single buffered']
    #allocation6 [shape = 's32[1]{0}', space=sflag, size = 0x4, scoped, tag = 'scoped memory for tpu_custom_call.1']
    #allocation7 [shape = 'u8[2048]{0}', space=vmem, size = 0x800, scoped, tag = 'input window, operand 2, single buffered']
    #allocation8 [shape = 'u8[32768]{0}', space=vmem, size = 0x8000, scoped, tag = 'input window, operand 4, single buffered']
    #allocation9 [shape = 's32[1]{0}', space=sflag, size = 0x4, scoped, tag = 'scoped memory for tpu_custom_call.1']
    #allocation10 [shape = 'u8[131072]{0}', space=vmem, size = 0x20000, scoped, tag = 'output window, operand 0']
    %12 = vsyncpa [#allocation3], 0
    %s13 = scalar_lea.sflag [#allocation3], 1
    %14 = vsyncpa %s13, 0
    %15 = vsyncpa [#allocation6], 0
    %16 = vsyncpa [#allocation9], 0
    %17 = vsyncpa [#allocation4], 0
    %s18 = scalar_lea.sflag [#allocation4], 1
    %19 = vsyncpa %s18, 0
    loop: start=0, step=1, limit=4
    $region2: #{tpu_custom_call.1} parent=1 // loop_pre_header
      _
    $region3: #{tpu_custom_call.1} parent=1 // loop_header
      %s21 = sphi 0, %s25
      %p22 = scmp.ge.s32.totalorder %s21, 4
      %s31 = sphi 0, %s33
      %s34 = sphi 0, %s31
      %s35 = sphi 0, %s34
      %s51 = sphi 0, %s35
      %s55 = sphi 0, %s55
      %s57 = sphi 0, %s55
      %s58 = sphi 0, %s57
      %s72 = sphi 0, %s58
      %s76 = sphi 0, %s76
      %s78 = sphi 0, %s76
      %s79 = sphi 0, %s78
      %s93 = sphi 0, %s79
      %s97 = sphi 0, %s97
      %s99 = sphi 0, %s97
      %s100 = sphi 0, %s99
      %s114 = sphi 0, %s100
      %s118 = sphi 0, %s118
      %s120 = sphi 0, %s118
      %s121 = sphi 0, %s120
      %s135 = sphi 0, %s121
      %s139 = sphi 0, %s139
      %s141 = sphi 0, %s139
      %s142 = sphi 0, %s141
      %s156 = sphi 0, %s142
      %s160 = sphi 0, %s160
      %s162 = sphi 0, %s160
      %s163 = sphi 0, %s162
      %s177 = sphi 0, %s163
      %s183 = sphi 0, %s185
      %s186 = sphi 0, %s183
      %s187 = sphi 0, %s186
      %s203 = sphi 0, %s187
    $region4: #{tpu_custom_call.1} parent=1 // loop_header_branch
      %24 = sbr.rel (%p22) target = $region8
    $region5: #{tpu_custom_call.1} parent=1 // loop_body
      %s26 = ssub.s32 %s21, 1
      %s27 = ssub.s32 %s21, 2
      %s28 = sadd.s32 %s21, 1
      %s29 = ssub.s32 %s21, %s28
      %p30 = scmp.eq.s32.totalorder %s29, 0
      %s32 = sadd.s32 %s31, 1
      %s33 = scalar_select %p30, %s31, %s32
      %p36 = pneg %p30
      %p37 = scmp.eq.s32.totalorder %s21, 1
      %p38 = por %p36, %p37
      %p39 = scmp.ne.s32.totalorder %s31, %s34
      %p40 = scmp.eq.s32.totalorder %s21, 0
      %p41 = por %p39, %p40
      %p42 = scmp.ne.s32.totalorder %s31, %s34
      %p43 = scmp.eq.s32.totalorder %s26, 1
      %p44 = por %p42, %p43
      %p45 = scmp.ne.s32.totalorder %s34, %s35
      %p46 = scmp.eq.s32.totalorder %s26, 0
      %p47 = por %p45, %p46
      %p48 = scmp.ne.s32.totalorder %s34, %s35
      %p49 = scmp.eq.s32.totalorder %s27, 1
      %p50 = por %p48, %p49
      %p52 = scmp.ne.s32.totalorder %s35, %s51
      %p53 = scmp.eq.s32.totalorder %s27, 0
      %p54 = por %p52, %p53
      %s56 = sadd.s32 %s55, 1
      %p59 = scmp.eq.s32.totalorder %s21, 1
      %p60 = scmp.ne.s32.totalorder %s55, %s57
      %p61 = scmp.eq.s32.totalorder %s21, 0
      %p62 = por %p60, %p61
      %p63 = scmp.ne.s32.totalorder %s55, %s57
      %p64 = scmp.eq.s32.totalorder %s26, 1
      %p65 = por %p63, %p64
      %p66 = scmp.ne.s32.totalorder %s57, %s58
      %p67 = scmp.eq.s32.totalorder %s26, 0
      %p68 = por %p66, %p67
      %p69 = scmp.ne.s32.totalorder %s57, %s58
      %p70 = scmp.eq.s32.totalorder %s27, 1
      %p71 = por %p69, %p70
      %p73 = scmp.ne.s32.totalorder %s58, %s72
      %p74 = scmp.eq.s32.totalorder %s27, 0
      %p75 = por %p73, %p74
      %s77 = sadd.s32 %s76, 1
      %p80 = scmp.eq.s32.totalorder %s21, 1
      %p81 = scmp.ne.s32.totalorder %s76, %s78
      %p82 = scmp.eq.s32.totalorder %s21, 0
      %p83 = por %p81, %p82
      %p84 = scmp.ne.s32.totalorder %s76, %s78
      %p85 = scmp.eq.s32.totalorder %s26, 1
      %p86 = por %p84, %p85
      %p87 = scmp.ne.s32.totalorder %s78, %s79
      %p88 = scmp.eq.s32.totalorder %s26, 0
      %p89 = por %p87, %p88
      %p90 = scmp.ne.s32.totalorder %s78, %s79
      %p91 = scmp.eq.s32.totalorder %s27, 1
      %p92 = por %p90, %p91
      %p94 = scmp.ne.s32.totalorder %s79, %s93
      %p95 = scmp.eq.s32.totalorder %s27, 0
      %p96 = por %p94, %p95
      %s98 = sadd.s32 %s97, 1
      %p101 = scmp.eq.s32.totalorder %s21, 1
      %p102 = scmp.ne.s32.totalorder %s97, %s99
      %p103 = scmp.eq.s32.totalorder %s21, 0
      %p104 = por %p102, %p103
      %p105 = scmp.ne.s32.totalorder %s97, %s99
      %p106 = scmp.eq.s32.totalorder %s26, 1
      %p107 = por %p105, %p106
      %p108 = scmp.ne.s32.totalorder %s99, %s100
      %p109 = scmp.eq.s32.totalorder %s26, 0
      %p110 = por %p108, %p109
      %p111 = scmp.ne.s32.totalorder %s99, %s100
      %p112 = scmp.eq.s32.totalorder %s27, 1
      %p113 = por %p111, %p112
      %p115 = scmp.ne.s32.totalorder %s100, %s114
      %p116 = scmp.eq.s32.totalorder %s27, 0
      %p117 = por %p115, %p116
      %s119 = sadd.s32 %s118, 1
      %p122 = scmp.eq.s32.totalorder %s21, 1
      %p123 = scmp.ne.s32.totalorder %s118, %s120
      %p124 = scmp.eq.s32.totalorder %s21, 0
      %p125 = por %p123, %p124
      %p126 = scmp.ne.s32.totalorder %s118, %s120
      %p127 = scmp.eq.s32.totalorder %s26, 1
      %p128 = por %p126, %p127
      %p129 = scmp.ne.s32.totalorder %s120, %s121
      %p130 = scmp.eq.s32.totalorder %s26, 0
      %p131 = por %p129, %p130
      %p132 = scmp.ne.s32.totalorder %s120, %s121
      %p133 = scmp.eq.s32.totalorder %s27, 1
      %p134 = por %p132, %p133
      %p136 = scmp.ne.s32.totalorder %s121, %s135
      %p137 = scmp.eq.s32.totalorder %s27, 0
      %p138 = por %p136, %p137
      %s140 = sadd.s32 %s139, 1
      %p143 = scmp.eq.s32.totalorder %s21, 1
      %p144 = scmp.ne.s32.totalorder %s139, %s141
      %p145 = scmp.eq.s32.totalorder %s21, 0
      %p146 = por %p144, %p145
      %p147 = scmp.ne.s32.totalorder %s139, %s141
      %p148 = scmp.eq.s32.totalorder %s26, 1
      %p149 = por %p147, %p148
      %p150 = scmp.ne.s32.totalorder %s141, %s142
      %p151 = scmp.eq.s32.totalorder %s26, 0
      %p152 = por %p150, %p151
      %p153 = scmp.ne.s32.totalorder %s141, %s142
      %p154 = scmp.eq.s32.totalorder %s27, 1
      %p155 = por %p153, %p154
      %p157 = scmp.ne.s32.totalorder %s142, %s156
      %p158 = scmp.eq.s32.totalorder %s27, 0
      %p159 = por %p157, %p158
      %s161 = sadd.s32 %s160, 1
      %p164 = scmp.eq.s32.totalorder %s21, 1
      %p165 = scmp.ne.s32.totalorder %s160, %s162
      %p166 = scmp.eq.s32.totalorder %s21, 0
      %p167 = por %p165, %p166
      %p168 = scmp.ne.s32.totalorder %s160, %s162
      %p169 = scmp.eq.s32.totalorder %s26, 1
      %p170 = por %p168, %p169
      %p171 = scmp.ne.s32.totalorder %s162, %s163
      %p172 = scmp.eq.s32.totalorder %s26, 0
      %p173 = por %p171, %p172
      %p174 = scmp.ne.s32.totalorder %s162, %s163
      %p175 = scmp.eq.s32.totalorder %s27, 1
      %p176 = por %p174, %p175
      %p178 = scmp.ne.s32.totalorder %s163, %s177
      %p179 = scmp.eq.s32.totalorder %s27, 0
      %p180 = por %p178, %p179
      %s181 = ssub.s32 %s21, %s28
      %p182 = scmp.eq.s32.totalorder %s181, 0
      %s184 = sadd.s32 %s183, 1
      %s185 = scalar_select %p182, %s183, %s184
      %p188 = pneg %p182
      %p189 = scmp.eq.s32.totalorder %s21, 1
      %p190 = por %p188, %p189
      %p191 = scmp.ne.s32.totalorder %s183, %s186
      %p192 = scmp.eq.s32.totalorder %s21, 0
      %p193 = por %p191, %p192
      %p194 = scmp.ne.s32.totalorder %s183, %s186
      %p195 = scmp.eq.s32.totalorder %s26, 1
      %p196 = por %p194, %p195
      %p197 = scmp.ne.s32.totalorder %s186, %s187
      %p198 = scmp.eq.s32.totalorder %s26, 0
      %p199 = por %p197, %p198
      %p200 = scmp.ne.s32.totalorder %s186, %s187
      %p201 = scmp.eq.s32.totalorder %s27, 1
      %p202 = por %p200, %p201
      %p204 = scmp.ne.s32.totalorder %s187, %s203
      %p205 = scmp.eq.s32.totalorder %s27, 0
      %p206 = por %p204, %p205
      %p207 = scmp.le.s32.totalorder 1, %s21
      %p208 = scmp.lt.s32.totalorder %s21, 3
      %p209 = pnand %p207, %p208
      %p210 = pneg %p209
      // Predicated region
      $region9: #{tpu_custom_call.1} parent=5 // pred_check
        _
      $region10: #{tpu_custom_call.1} parent=5 // pred_check_branch
        %212 = sbr.rel (%p209) target = $region12
      $region11: #{tpu_custom_call.1} parent=5 // pred_region
        %s213 = ssub.s32 %s21, 1
        // Predicated region
        $region13: #{tpu_custom_call.1} parent=11 // pred_check
          %p214 = pneg %p68
        $region14: #{tpu_custom_call.1} parent=11 // pred_check_branch
          %216 = sbr.rel (%p214) target = $region16
        $region15: #{tpu_custom_call.1} parent=11 // pred_region
          %s218 = ssub.s32 1792, 1792
          %219 = vsyncadd [#allocation6], %s218
          %s220 = sshll.u32 [#allocation5], 4
          %s221 = int_to_ptr.vmem [resolvable:$true] %s220
          %226 = dma.hbm_to_vmem [thread:$0]  %s1, 1792, %s221, [#allocation6], 256, 256, 16
        $region16: #{tpu_custom_call.1} parent=11 // pred_fallthru
          _
        // Predicated region
        $region17: #{tpu_custom_call.1} parent=11 // pred_check
          %p227 = pneg %p89
        $region18: #{tpu_custom_call.1} parent=11 // pred_check_branch
          %229 = sbr.rel (%p227) target = $region20
        $region19: #{tpu_custom_call.1} parent=11 // pred_region
          %s231 = ssub.s32 64, 64
          %232 = vsyncadd [#allocation6], %s231
          %s234 = sshll.u32 [#allocation7], 4
          %s235 = int_to_ptr.vmem [resolvable:$true] %s234
          %237 = dma.hbm_to_vmem [thread:$0]  %s2, 64, %s235, [#allocation6]
        $region20: #{tpu_custom_call.1} parent=11 // pred_fallthru
          _
        // Predicated region
        $region21: #{tpu_custom_call.1} parent=11 // pred_check
          %p238 = pneg %p110
        $region22: #{tpu_custom_call.1} parent=11 // pred_check_branch
          %240 = sbr.rel (%p238) target = $region24
        $region23: #{tpu_custom_call.1} parent=11 // pred_region
          _
        $region24: #{tpu_custom_call.1} parent=11 // pred_fallthru
          _
        // Predicated region
        $region25: #{tpu_custom_call.1} parent=11 // pred_check
          %p241 = pneg %p131
        $region26: #{tpu_custom_call.1} parent=11 // pred_check_branch
          %243 = sbr.rel (%p241) target = $region28
        $region27: #{tpu_custom_call.1} parent=11 // pred_region
          %s245 = ssub.s32 1024, 1024
          %246 = vsyncadd [#allocation9], %s245
          %s247 = sshll.u32 [#allocation8], 4
          %s248 = int_to_ptr.vmem [resolvable:$true] %s247
          %253 = dma.hbm_to_vmem [thread:$0]  %s4, 1024, %s248, [#allocation9], 128, 128, 8
        $region28: #{tpu_custom_call.1} parent=11 // pred_fallthru
          _
        // Predicated region
        $region29: #{tpu_custom_call.1} parent=11 // pred_check
          %p254 = pneg %p152
        $region30: #{tpu_custom_call.1} parent=11 // pred_check_branch
          %256 = sbr.rel (%p254) target = $region32
        $region31: #{tpu_custom_call.1} parent=11 // pred_region
          _
        $region32: #{tpu_custom_call.1} parent=11 // pred_fallthru
          _
        // Predicated region
        $region33: #{tpu_custom_call.1} parent=11 // pred_check
          %p257 = pneg %p173
        $region34: #{tpu_custom_call.1} parent=11 // pred_check_branch
          %259 = sbr.rel (%p257) target = $region36
        $region35: #{tpu_custom_call.1} parent=11 // pred_region
          _
        $region36: #{tpu_custom_call.1} parent=11 // pred_fallthru
          _
      $region12: #{tpu_custom_call.1} parent=5 // pred_fallthru
        _
      %p260 = scmp.lt.s32.totalorder %s21, 2
      // Predicated region
      $region37: #{tpu_custom_call.1} parent=5 // pred_check
        %p261 = pneg %p260
      $region38: #{tpu_custom_call.1} parent=5 // pred_check_branch
        %263 = sbr.rel (%p261) target = $region40
      $region39: #{tpu_custom_call.1} parent=5 // pred_region
        // Predicated region
        $region41: #{tpu_custom_call.1} parent=39 // pred_check
          %p264 = pneg %p41
        $region42: #{tpu_custom_call.1} parent=39 // pred_check_branch
          %266 = sbr.rel (%p264) target = $region44
        $region43: #{tpu_custom_call.1} parent=39 // pred_region
          %s267 = sand.u32 %s31, 1
          %s268 = scalar_lea.sflag [#allocation3], %s267
          %s269 = sand.u32 %s31, 1
          %s270 = smul.addr %s269, 128
          %s271 = scalar_lea.vmem [#allocation2], %s270
          %s273 = ssub.s32 2048, 2048
          %274 = vsyncadd %s268, %s273
          %s275 = smul.addr %s21, 16
          %s276 = smul.addr %s275, 128
          %s277 = scalar_lea.hbm %s0, %s276
          %s278 = sshll.u32 %s271, 4
          %s279 = int_to_ptr.vmem [resolvable:$true] %s278
          %284 = dma.hbm_to_vmem [thread:$0]  %s277, 2048, %s279, %s268, 256, 256, 16
        $region44: #{tpu_custom_call.1} parent=39 // pred_fallthru
          _
      $region40: #{tpu_custom_call.1} parent=5 // pred_fallthru
        _
      %p285 = scmp.le.s32.totalorder 1, %s21
      %p286 = scmp.lt.s32.totalorder %s21, 3
      %p287 = pnand %p285, %p286
      %p288 = pneg %p287
      // Predicated region
      $region45: #{tpu_custom_call.1} parent=5 // pred_check
        _
      $region46: #{tpu_custom_call.1} parent=5 // pred_check_branch
        %290 = sbr.rel (%p287) target = $region48
      $region47: #{tpu_custom_call.1} parent=5 // pred_region
        %s291 = ssub.s32 %s21, 1
        %s292 = sand.u32 %s34, 1
        %s293 = scalar_lea.sflag [#allocation3], %s292
        %s294 = sand.u32 %s34, 1
        %s295 = smul.addr %s294, 128
        %s296 = scalar_lea.vmem [#allocation2], %s295
        // Predicated region
        $region49: #{tpu_custom_call.1} parent=47 // pred_check
          %p297 = pneg %p47
        $region50: #{tpu_custom_call.1} parent=47 // pred_check_branch
          %299 = sbr.rel (%p297) target = $region52
        $region51: #{tpu_custom_call.1} parent=47 // pred_region
          %300 = dma.done %s293, 2048
        $region52: #{tpu_custom_call.1} parent=47 // pred_fallthru
          _
        // Predicated region
        $region53: #{tpu_custom_call.1} parent=47 // pred_check
          %p301 = pneg %p68
        $region54: #{tpu_custom_call.1} parent=47 // pred_check_branch
          %303 = sbr.rel (%p301) target = $region56
        $region55: #{tpu_custom_call.1} parent=47 // pred_region
          %304 = dma.done [#allocation6], 1792
        $region56: #{tpu_custom_call.1} parent=47 // pred_fallthru
          _
        // Predicated region
        $region57: #{tpu_custom_call.1} parent=47 // pred_check
          %p305 = pneg %p89
        $region58: #{tpu_custom_call.1} parent=47 // pred_check_branch
          %307 = sbr.rel (%p305) target = $region60
        $region59: #{tpu_custom_call.1} parent=47 // pred_region
          %308 = dma.done [#allocation6], 64
        $region60: #{tpu_custom_call.1} parent=47 // pred_fallthru
          _
        // Predicated region
        $region61: #{tpu_custom_call.1} parent=47 // pred_check
          %p309 = pneg %p131
        $region62: #{tpu_custom_call.1} parent=47 // pred_check_branch
          %311 = sbr.rel (%p309) target = $region64
        $region63: #{tpu_custom_call.1} parent=47 // pred_region
          %312 = dma.done [#allocation9], 1024
        $region64: #{tpu_custom_call.1} parent=47 // pred_fallthru
          _
        %s313 = sand.u32 %s34, 1
        %s314 = scalar_lea.sflag [#allocation3], %s313
        %s315 = sand.u32 %s34, 1
        %s316 = smul.addr %s315, 128
        %s317 = scalar_lea.vmem [#allocation2], %s316
        %p318 = pneg %p47
        %p319 = pneg %p44
        %p320 = pneg %p68
        %p321 = pneg %p65
        %p322 = pneg %p89
        %p323 = pneg %p86
        %p324 = pneg %p110
        %p325 = pneg %p107
        %p326 = pneg %p131
        %p327 = pneg %p128
        %p328 = pneg %p152
        %p329 = pneg %p149
        %p330 = pneg %p173
        %p331 = pneg %p170
        %p332 = pneg %p199
        %p333 = pneg %p196
        %s334 = sand.u32 %s186, 1
        %s335 = scalar_lea.sflag [#allocation4], %s334
        %s336 = sand.u32 %s186, 1
        %s337 = smul.addr %s336, 128
        %s338 = scalar_lea.vmem [#allocation10], %s337
        %v339 = vld [vmem:[#allocation5] sm:$0xff]
        %v340 = vld [vmem:[#allocation5 + $0x8] sm:$0xff]
        %v341 = vld [vmem:[#allocation5 + $0x10] sm:$0xff]
        %v342 = vld [vmem:[#allocation5 + $0x18] sm:$0xff]
        %v343 = vld [vmem:[#allocation5 + $0x20] sm:$0xff]
        %v344 = vld [vmem:[#allocation5 + $0x28] sm:$0xff]
        %v345 = vld [vmem:[#allocation5 + $0x30] sm:$0xff]
        %v346 = vld [vmem:[#allocation5 + $0x38] sm:$0xff]
        %v347 = vld [vmem:[#allocation5 + $0x40] sm:$0xff]
        %v348 = vld [vmem:[#allocation5 + $0x48] sm:$0xff]
        %v349 = vld [vmem:[#allocation5 + $0x50] sm:$0xff]
        %v350 = vld [vmem:[#allocation5 + $0x58] sm:$0xff]
        %v351 = vld [vmem:[#allocation5 + $0x60] sm:$0x1]
        %v352 = vld [vmem:[#allocation5 + $0x68] sm:$0x1]
        %v353 = vld [vmem:[#allocation8] sm:$0xff]
        %v354 = vld [vmem:[#allocation8 + $0x8] sm:$0xff]
        %v355 = vld [vmem:[#allocation8 + $0x10] sm:$0xff]
        %v356 = vld [vmem:[#allocation8 + $0x18] sm:$0xff]
        %v357 = vld [vmem:[#allocation8 + $0x20] sm:$0xff]
        %v358 = vld [vmem:[#allocation8 + $0x28] sm:$0xff]
        %v359 = vld [vmem:[#allocation8 + $0x30] sm:$0xff]
        %v360 = vld [vmem:[#allocation8 + $0x38] sm:$0xff]
        %v361 = vld [vmem:[#allocation7] sm:$0x1]
        %v362 = vld [vmem:[%s3] sm:$0x1]
        %v363 = vld [vmem:[#allocation7 + $0x1] sm:$0x1]
        %v364 = vld [vmem:[%s3 + $0x1] sm:$0x1]
        %v365 = vld [vmem:[#allocation7 + $0x2] sm:$0x1]
        %v366 = vld [vmem:[%s3 + $0x2] sm:$0x1]
        %v367 = vld [vmem:[%s5] sm:$0x1]
        %v368 = vld [vmem:[%s6] sm:$0x1]
        %v369 = vld [vmem:[%s296] sm:$0xff]
        %v370 = vld [vmem:[%s296 + $0x8] sm:$0xff]
        %v371 = vld [vmem:[%s296 + $0x10] sm:$0xff]
        %v372 = vld [vmem:[%s296 + $0x18] sm:$0xff]
        %v373 = vld [vmem:[%s296 + $0x20] sm:$0xff]
        %v374 = vld [vmem:[%s296 + $0x28] sm:$0xff]
        %v375 = vld [vmem:[%s296 + $0x30] sm:$0xff]
        %v376 = vld [vmem:[%s296 + $0x38] sm:$0xff]
        %v377 = vld [vmem:[%s296 + $0x40] sm:$0xff]
        %v378 = vld [vmem:[%s296 + $0x48] sm:$0xff]
        %v379 = vld [vmem:[%s296 + $0x50] sm:$0xff]
        %v380 = vld [vmem:[%s296 + $0x58] sm:$0xff]
        %v381 = vld [vmem:[%s296 + $0x60] sm:$0xff]
        %v382 = vld [vmem:[%s296 + $0x68] sm:$0xff]
        %v383 = vld [vmem:[%s296 + $0x70] sm:$0xff]
        %v384 = vld [vmem:[%s296 + $0x78] sm:$0xff]
        %vm385 = vcmask 556032
        %v387 = vsel %vm385, %v340, 0
        %v390 = vsel %vm385, %v342, 0
        %v393 = vsel %vm385, %v344, 0
        %v396 = vsel %vm385, %v346, 0
        %v399 = vsel %vm385, %v348, 0
        %v402 = vsel %vm385, %v350, 0
        %v405 = vsel %vm385, %v352, 0
        %v408 = vsel %vm385, %v370, 0
        %v411 = vsel %vm385, %v372, 0
        %v414 = vsel %vm385, %v374, 0
        %v417 = vsel %vm385, %v376, 0
        %v420 = vsel %vm385, %v378, 0
        %v423 = vsel %vm385, %v380, 0
        %v426 = vsel %vm385, %v382, 0
        %v429 = vsel %vm385, %v384, 0
        %431 = vmatprep.subr.mxu0 0.0
        %432 = vmatpush1.xpose.msra.mxu0 0.0
        %433 = vmatprep.subr.mxu0 0.0
        %434 = vmatpush1.xpose.msra.mxu0 0.0
        %435 = vmatprep.subr.mxu0 0.0
        %436 = vmatpush1.xpose.msra.mxu0 0.0
        %437 = vmatprep.subr.mxu0 0.0
        %438 = vmatpush1.xpose.msra.mxu0 0.0
        %439 = vmatprep.subr.mxu0 0.0
        %440 = vmatpush1.xpose.msra.mxu0 0.0
        %441 = vmatprep.subr.mxu0 0.0
        %442 = vmatpush1.xpose.msra.mxu0 0.0
        %443 = vmatprep.subr.mxu0 0.0
        %444 = vmatpush1.xpose.msra.mxu0 0.0
        %445 = vmatprep.subr.mxu0 0.0
        %446 = vmatpush1.xpose.msra.mxu0 0.0
        %447 = vmatprep.subr.mxu0 %v429
        %448 = vmatpush1.xpose.msra.mxu0 %v383
        %449 = vmatprep.subr.mxu0 %v426
        %450 = vmatpush1.xpose.msra.mxu0 %v381
        %451 = vmatprep.subr.mxu0 %v423
        %452 = vmatpush1.xpose.msra.mxu0 %v379
        %453 = vmatprep.subr.mxu0 %v420
        %454 = vmatpush1.xpose.msra.mxu0 %v377
        %455 = vmatprep.subr.mxu0 %v417
        %456 = vmatpush1.xpose.msra.mxu0 %v375
        %457 = vmatprep.subr.mxu0 %v414
        %458 = vmatpush1.xpose.msra.mxu0 %v373
        %459 = vmatprep.subr.mxu0 %v411
        %460 = vmatpush1.xpose.msra.mxu0 %v371
        %461 = vmatprep.subr.mxu0 %v408
        %462 = vmatpush1.xpose.msra.mxu0 %v369
        %463 = vmatprep.subr.mxu0 0.0
        %464 = vmatpush2.xpose.msra.mxu0 0.0
        %465 = vmatprep.subr.mxu0 0.0
        %466 = vmatpush2.xpose.msra.mxu0 0.0
        %467 = vmatprep.subr.mxu0 0.0
        %468 = vmatpush2.xpose.msra.mxu0 0.0
        %469 = vmatprep.subr.mxu0 0.0
        %470 = vmatpush2.xpose.msra.mxu0 0.0
        %471 = vmatprep.subr.mxu0 0.0
        %472 = vmatpush2.xpose.msra.mxu0 0.0
        %473 = vmatprep.subr.mxu0 0.0
        %474 = vmatpush2.xpose.msra.mxu0 0.0
        %475 = vmatprep.subr.mxu0 0.0
        %476 = vmatpush2.xpose.msra.mxu0 0.0
        %477 = vmatprep.subr.mxu0 0.0
        %478 = vmatpush2.xpose.msra.mxu0 0.0
        %479 = vmatprep.subr.mxu0 0.0
        %480 = vmatpush2.xpose.msra.mxu0 0.0
        %481 = vmatprep.subr.mxu0 0.0
        %482 = vmatpush2.xpose.msra.mxu0 0.0
        %483 = vmatprep.subr.mxu0 0.0
        %484 = vmatpush2.xpose.msra.mxu0 0.0
        %485 = vmatprep.subr.mxu0 0.0
        %486 = vmatpush2.xpose.msra.mxu0 0.0
        %487 = vmatprep.subr.mxu0 0.0
        %488 = vmatpush2.xpose.msra.mxu0 0.0
        %489 = vmatprep.subr.mxu0 0.0
        %490 = vmatpush2.xpose.msra.mxu0 0.0
        %491 = vmatprep.subr.mxu0 0.0
        %492 = vmatpush2.xpose.msra.mxu0 0.0
        %493 = vmatprep.subr.mxu0 0.0
        %494 = vmatpush2.xpose.msra.mxu0 0.0
        %495 = vmatprep.mubr.f32.mxu0 %v387
        %496 = vmatmul.mubr.f32.gmra.mxu0 %v339
        %v497 = vpop.f32.mrf.mxu0
        %v498 = vadd.f32 0.0, %v497
        %v499 = vpop.f32.mrf.mxu0
        %500 = vmatprep.mubr.f32.mxu0 %v390
        %501 = vmatmul.mubr.f32.gmra.mxu0 %v341
        %v502 = vpop.f32.mrf.mxu0
        %v503 = vadd.f32 0.0, %v502
        %v504 = vpop.f32.mrf.mxu0
        %505 = vmatprep.mubr.f32.mxu0 %v393
        %506 = vmatmul.mubr.f32.gmra.mxu0 %v343
        %v507 = vpop.f32.mrf.mxu0
        %v508 = vadd.f32 0.0, %v507
        %v509 = vpop.f32.mrf.mxu0
        %510 = vmatprep.mubr.f32.mxu0 %v396
        %511 = vmatmul.mubr.f32.gmra.mxu0 %v345
        %v512 = vpop.f32.mrf.mxu0
        %v513 = vadd.f32 0.0, %v512
        %v514 = vpop.f32.mrf.mxu0
        %515 = vmatprep.mubr.f32.mxu0 %v399
        %516 = vmatmul.mubr.f32.gmra.mxu0 %v347
        %v517 = vpop.f32.mrf.mxu0
        %v518 = vadd.f32 0.0, %v517
        %v519 = vpop.f32.mrf.mxu0
        %520 = vmatprep.mubr.f32.mxu0 %v402
        %521 = vmatmul.mubr.f32.gmra.mxu0 %v349
        %v522 = vpop.f32.mrf.mxu0
        %v523 = vadd.f32 0.0, %v522
        %v524 = vpop.f32.mrf.mxu0
        %525 = vmatprep.mubr.f32.mxu0 %v405
        %526 = vmatmul.mubr.f32.gmra.mxu0 %v351
        %v527 = vpop.f32.mrf.mxu0
        %v528 = vadd.f32 0.0, %v527
        %v529 = vpop.f32.mrf.mxu0
        %530 = vdwg.mxu0
        %v531 = vmul.f32 %v498, 0.25
        %v532 = vmul.f32 %v503, 0.25
        %v533 = vmul.f32 %v508, 0.25
        %v534 = vmul.f32 %v513, 0.25
        %v535 = vmul.f32 %v518, 0.25
        %v536 = vmul.f32 %v523, 0.25
        %v537 = vmul.f32 %v528, 0.25
        %vm538 = vcmask 523264
        %v539 = vsel %vm538, %v531, 0.0
        %540 = vadd.xlane.f32.xlu0 %v539
        %v541 = vpop.xlane.xlu0 %540
        %v542 = vsel %vm538, %v532, 0.0
        %543 = vadd.xlane.f32.xlu0 %v542
        %v544 = vpop.xlane.xlu0 %543
        %v545 = vsel %vm538, %v533, 0.0
        %546 = vadd.xlane.f32.xlu0 %v545
        %v547 = vpop.xlane.xlu0 %546
        %v548 = vsel %vm538, %v534, 0.0
        %549 = vadd.xlane.f32.xlu0 %v548
        %v550 = vpop.xlane.xlu0 %549
        %v551 = vsel %vm538, %v535, 0.0
        %552 = vadd.xlane.f32.xlu0 %v551
        %v553 = vpop.xlane.xlu0 %552
        %v554 = vsel %vm538, %v536, 0.0
        %555 = vadd.xlane.f32.xlu0 %v554
        %v556 = vpop.xlane.xlu0 %555
        %vm557 = vcmask 516096
        %v558 = vsel %vm557, %v537, 0.0
        %559 = vadd.xlane.f32.xlu0 %v558
        %v560 = vpop.xlane.xlu0 %559
        %v561 = vrcp.pop 64.0
        %v562 = vmul.f32 %v541, %v561
        %v563 = vmul.f32 %v544, %v561
        %v564 = vmul.f32 %v547, %v561
        %v565 = vmul.f32 %v550, %v561
        %v566 = vmul.f32 %v553, %v561
        %v567 = vmul.f32 %v556, %v561
        %v568 = vmul.f32 %v560, %v561
        %v569 = vsub.f32 %v531, %v562
        %v570 = vsub.f32 %v532, %v563
        %v571 = vsub.f32 %v533, %v564
        %v572 = vsub.f32 %v534, %v565
        %v573 = vsub.f32 %v535, %v566
        %v574 = vsub.f32 %v536, %v567
        %v575 = vsub.f32 %v537, %v568
        %v576 = vmul.f32 %v569, %v569
        %v577 = vmul.f32 %v570, %v570
        %v578 = vmul.f32 %v571, %v571
        %v579 = vmul.f32 %v572, %v572
        %v580 = vmul.f32 %v573, %v573
        %v581 = vmul.f32 %v574, %v574
        %v582 = vmul.f32 %v575, %v575
        %v583 = vsel %vm538, %v576, 0.0
        %584 = vadd.xlane.f32.xlu0 %v583
        %v585 = vpop.xlane.xlu0 %584
        %v586 = vsel %vm538, %v577, 0.0
        %587 = vadd.xlane.f32.xlu0 %v586
        %v588 = vpop.xlane.xlu0 %587
        %v589 = vsel %vm538, %v578, 0.0
        %590 = vadd.xlane.f32.xlu0 %v589
        %v591 = vpop.xlane.xlu0 %590
        %v592 = vsel %vm538, %v579, 0.0
        %593 = vadd.xlane.f32.xlu0 %v592
        %v594 = vpop.xlane.xlu0 %593
        %v595 = vsel %vm538, %v580, 0.0
        %596 = vadd.xlane.f32.xlu0 %v595
        %v597 = vpop.xlane.xlu0 %596
        %v598 = vsel %vm538, %v581, 0.0
        %599 = vadd.xlane.f32.xlu0 %v598
        %v600 = vpop.xlane.xlu0 %599
        %v601 = vsel %vm557, %v582, 0.0
        %602 = vadd.xlane.f32.xlu0 %v601
        %v603 = vpop.xlane.xlu0 %602
        %v604 = vmul.f32 %v585, %v561
        %v605 = vmul.f32 %v588, %v561
        %v606 = vmul.f32 %v591, %v561
        %v607 = vmul.f32 %v594, %v561
        %v608 = vmul.f32 %v597, %v561
        %v609 = vmul.f32 %v600, %v561
        %v610 = vmul.f32 %v603, %v561
        %v611 = vadd.f32 %v604, 1e-06
        %v612 = vadd.f32 %v605, 1e-06
        %v613 = vadd.f32 %v606, 1e-06
        %v614 = vadd.f32 %v607, 1e-06
        %v615 = vadd.f32 %v608, 1e-06
        %v616 = vadd.f32 %v609, 1e-06
        %v617 = vadd.f32 %v610, 1e-06
        %v618 = vrsqrt.pop %v611
        %v619 = vrsqrt.pop %v612
        %v620 = vrsqrt.pop %v613
        %v621 = vrsqrt.pop %v614
        %v622 = vrsqrt.pop %v615
        %v623 = vrsqrt.pop %v616
        %v624 = vrsqrt.pop %v617
        %v625 = vmul.f32 %v569, %v618
        %v626 = vmul.f32 %v570, %v619
        %v627 = vmul.f32 %v571, %v620
        %v628 = vmul.f32 %v572, %v621
        %v629 = vmul.f32 %v573, %v622
        %v630 = vmul.f32 %v574, %v623
        %v631 = vmul.f32 %v575, %v624
        %v632 = vlaneseq
        %v633 = vshrl.u32 %v632, 7
        %v634 = vsub.s32 0, %v633
        %v635 = vrot.slane %v361, %v634
        %v636 = vmul.f32 %v625, %v635
        %v637 = vmul.f32 %v626, %v635
        %v638 = vmul.f32 %v627, %v635
        %v639 = vmul.f32 %v628, %v635
        %v640 = vmul.f32 %v629, %v635
        %v641 = vmul.f32 %v630, %v635
        %v642 = vmul.f32 %v631, %v635
        %v643 = vlaneseq
        %v644 = vshrl.u32 %v643, 7
        %v645 = vsub.s32 0, %v644
        %v646 = vrot.slane %v362, %v645
        %v647 = vadd.f32 %v636, %v646
        %v648 = vadd.f32 %v637, %v646
        %v649 = vadd.f32 %v638, %v646
        %v650 = vadd.f32 %v639, %v646
        %v651 = vadd.f32 %v640, %v646
        %v652 = vadd.f32 %v641, %v646
        %v653 = vadd.f32 %v642, %v646
        %v654 = vlaneseq
        %v655 = vshrl.u32 %v654, 7
        %v656 = vsub.s32 0, %v655
        %v657 = vrot.slane %v363, %v656
        %v658 = vmul.f32 %v625, %v657
        %v659 = vmul.f32 %v626, %v657
        %v660 = vmul.f32 %v627, %v657
        %v661 = vmul.f32 %v628, %v657
        %v662 = vmul.f32 %v629, %v657
        %v663 = vmul.f32 %v630, %v657
        %v664 = vmul.f32 %v631, %v657
        %v665 = vlaneseq
        %v666 = vshrl.u32 %v665, 7
        %v667 = vsub.s32 0, %v666
        %v668 = vrot.slane %v364, %v667
        %v669 = vadd.f32 %v658, %v668
        %v670 = vadd.f32 %v659, %v668
        %v671 = vadd.f32 %v660, %v668
        %v672 = vadd.f32 %v661, %v668
        %v673 = vadd.f32 %v662, %v668
        %v674 = vadd.f32 %v663, %v668
        %v675 = vadd.f32 %v664, %v668
        %v676 = vlaneseq
        %v677 = vshrl.u32 %v676, 7
        %v678 = vsub.s32 0, %v677
        %v679 = vrot.slane %v365, %v678
        %v680 = vmul.f32 %v625, %v679
        %v681 = vmul.f32 %v626, %v679
        %v682 = vmul.f32 %v627, %v679
        %v683 = vmul.f32 %v628, %v679
        %v684 = vmul.f32 %v629, %v679
        %v685 = vmul.f32 %v630, %v679
        %v686 = vmul.f32 %v631, %v679
        %v687 = vlaneseq
        %v688 = vshrl.u32 %v687, 7
        %v689 = vsub.s32 0, %v688
        %v690 = vrot.slane %v366, %v689
        %v691 = vadd.f32 %v680, %v690
        %v692 = vadd.f32 %v681, %v690
        %v693 = vadd.f32 %v682, %v690
        %v694 = vadd.f32 %v683, %v690
        %v695 = vadd.f32 %v684, %v690
        %v696 = vadd.f32 %v685, %v690
        %v697 = vadd.f32 %v686, %v690
        %vm698 = vcmask 261120
        %v700 = vsel %vm698, %v647, 0
        %v703 = vsel %vm698, %v648, 0
        %v706 = vsel %vm698, %v649, 0
        %v709 = vsel %vm698, %v650, 0
        %v712 = vsel %vm698, %v651, 0
        %v715 = vsel %vm698, %v652, 0
        %v718 = vsel %vm698, %v653, 0
        %v721 = vsel %vm698, %v669, 0
        %v724 = vsel %vm698, %v670, 0
        %v727 = vsel %vm698, %v671, 0
        %v730 = vsel %vm698, %v672, 0
        %v733 = vsel %vm698, %v673, 0
        %v736 = vsel %vm698, %v674, 0
        %v739 = vsel %vm698, %v675, 0
        %741 = vmatprep.subr.mxu0 0.0
        %742 = vmatpush1.xpose.msra.mxu0 0.0
        %743 = vmatprep.subr.mxu0 0.0
        %744 = vmatpush1.xpose.msra.mxu0 0.0
        %745 = vmatprep.subr.mxu0 0.0
        %746 = vmatpush1.xpose.msra.mxu0 0.0
        %747 = vmatprep.subr.mxu0 0.0
        %748 = vmatpush1.xpose.msra.mxu0 0.0
        %749 = vmatprep.subr.mxu0 0.0
        %750 = vmatpush1.xpose.msra.mxu0 0.0
        %751 = vmatprep.subr.mxu0 0.0
        %752 = vmatpush1.xpose.msra.mxu0 0.0
        %753 = vmatprep.subr.mxu0 0.0
        %754 = vmatpush1.xpose.msra.mxu0 0.0
        %755 = vmatprep.subr.mxu0 0.0
        %756 = vmatpush1.xpose.msra.mxu0 0.0
        %757 = vmatprep.subr.mxu0 0.0
        %758 = vmatpush1.xpose.msra.mxu0 0.0
        %759 = vmatprep.subr.mxu0 0.0
        %760 = vmatpush1.xpose.msra.mxu0 %v739
        %761 = vmatprep.subr.mxu0 0.0
        %762 = vmatpush1.xpose.msra.mxu0 %v736
        %763 = vmatprep.subr.mxu0 0.0
        %764 = vmatpush1.xpose.msra.mxu0 %v733
        %765 = vmatprep.subr.mxu0 0.0
        %766 = vmatpush1.xpose.msra.mxu0 %v730
        %767 = vmatprep.subr.mxu0 0.0
        %768 = vmatpush1.xpose.msra.mxu0 %v727
        %769 = vmatprep.subr.mxu0 0.0
        %770 = vmatpush1.xpose.msra.mxu0 %v724
        %771 = vmatprep.subr.mxu0 0.0
        %772 = vmatpush1.xpose.msra.mxu0 %v721
        %773 = vmatprep.subr.mxu0 0.0
        %774 = vmatpush2.xpose.msra.mxu0 0.0
        %775 = vmatprep.subr.mxu0 0.0
        %776 = vmatpush2.xpose.msra.mxu0 0.0
        %777 = vmatprep.subr.mxu0 0.0
        %778 = vmatpush2.xpose.msra.mxu0 0.0
        %779 = vmatprep.subr.mxu0 0.0
        %780 = vmatpush2.xpose.msra.mxu0 0.0
        %781 = vmatprep.subr.mxu0 0.0
        %782 = vmatpush2.xpose.msra.mxu0 0.0
        %783 = vmatprep.subr.mxu0 0.0
        %784 = vmatpush2.xpose.msra.mxu0 0.0
        %785 = vmatprep.subr.mxu0 0.0
        %786 = vmatpush2.xpose.msra.mxu0 0.0
        %787 = vmatprep.subr.mxu0 0.0
        %788 = vmatpush2.xpose.msra.mxu0 0.0
        %789 = vmatprep.subr.mxu0 0.0
        %790 = vmatpush2.xpose.msra.mxu0 0.0
        %791 = vmatprep.subr.mxu0 0.0
        %792 = vmatpush2.xpose.msra.mxu0 0.0
        %793 = vmatprep.subr.mxu0 0.0
        %794 = vmatpush2.xpose.msra.mxu0 0.0
        %795 = vmatprep.subr.mxu0 0.0
        %796 = vmatpush2.xpose.msra.mxu0 0.0
        %797 = vmatprep.subr.mxu0 0.0
        %798 = vmatpush2.xpose.msra.mxu0 0.0
        %799 = vmatprep.subr.mxu0 0.0
        %800 = vmatpush2.xpose.msra.mxu0 0.0
        %801 = vmatprep.subr.mxu0 0.0
        %802 = vmatpush2.xpose.msra.mxu0 0.0
        %803 = vmatprep.subr.mxu0 0.0
        %804 = vmatpush2.xpose.msra.mxu0 0.0
        %805 = vmatprep.mubr.f32.mxu0 0.0
        %806 = vmatmul.mubr.f32.gmra.mxu0 %v700
        %v807 = vpop.f32.mrf.mxu0
        %v808 = vadd.f32 0.0, %v807
        %v809 = vpop.f32.mrf.mxu0
        %810 = vmatprep.mubr.f32.mxu0 0.0
        %811 = vmatmul.mubr.f32.gmra.mxu0 %v703
        %v812 = vpop.f32.mrf.mxu0
        %v813 = vadd.f32 0.0, %v812
        %v814 = vpop.f32.mrf.mxu0
        %815 = vmatprep.mubr.f32.mxu0 0.0
        %816 = vmatmul.mubr.f32.gmra.mxu0 %v706
        %v817 = vpop.f32.mrf.mxu0
        %v818 = vadd.f32 0.0, %v817
        %v819 = vpop.f32.mrf.mxu0
        %820 = vmatprep.mubr.f32.mxu0 0.0
        %821 = vmatmul.mubr.f32.gmra.mxu0 %v709
        %v822 = vpop.f32.mrf.mxu0
        %v823 = vadd.f32 0.0, %v822
        %v824 = vpop.f32.mrf.mxu0
        %825 = vmatprep.mubr.f32.mxu0 0.0
        %826 = vmatmul.mubr.f32.gmra.mxu0 %v712
        %v827 = vpop.f32.mrf.mxu0
        %v828 = vadd.f32 0.0, %v827
        %v829 = vpop.f32.mrf.mxu0
        %830 = vmatprep.mubr.f32.mxu0 0.0
        %831 = vmatmul.mubr.f32.gmra.mxu0 %v715
        %v832 = vpop.f32.mrf.mxu0
        %v833 = vadd.f32 0.0, %v832
        %v834 = vpop.f32.mrf.mxu0
        %835 = vmatprep.mubr.f32.mxu0 0.0
        %836 = vmatmul.mubr.f32.gmra.mxu0 %v718
        %v837 = vpop.f32.mrf.mxu0
        %v838 = vadd.f32 0.0, %v837
        %v839 = vpop.f32.mrf.mxu0
        %840 = vdwg.mxu0
        %v841 = vmul.f32 %v808, 0.17677669
        %v842 = vmul.f32 %v813, 0.17677669
        %v843 = vmul.f32 %v818, 0.17677669
        %v844 = vmul.f32 %v823, 0.17677669
        %v845 = vmul.f32 %v828, 0.17677669
        %v846 = vmul.f32 %v833, 0.17677669
        %v847 = vmul.f32 %v838, 0.17677669
        %vm848 = vcmask 400384
        %v849 = vsel %vm848, %v841, -inf
        %850 = vmax.xlane.f32.xlu0 %v849
        %v851 = vpop.xlane.xlu0 %850
        %v852 = vsel %vm848, %v842, -inf
        %853 = vmax.xlane.f32.xlu0 %v852
        %v854 = vpop.xlane.xlu0 %853
        %v855 = vsel %vm848, %v843, -inf
        %856 = vmax.xlane.f32.xlu0 %v855
        %v857 = vpop.xlane.xlu0 %856
        %v858 = vsel %vm848, %v844, -inf
        %859 = vmax.xlane.f32.xlu0 %v858
        %v860 = vpop.xlane.xlu0 %859
        %v861 = vsel %vm848, %v845, -inf
        %862 = vmax.xlane.f32.xlu0 %v861
        %v863 = vpop.xlane.xlu0 %862
        %v864 = vsel %vm848, %v846, -inf
        %865 = vmax.xlane.f32.xlu0 %v864
        %v866 = vpop.xlane.xlu0 %865
        %vm867 = vcmask 393216
        %v868 = vsel %vm867, %v847, -inf
        %869 = vmax.xlane.f32.xlu0 %v868
        %v870 = vpop.xlane.xlu0 %869
        %v871 = vsub.f32 %v841, %v851
        %v872 = vsub.f32 %v842, %v854
        %v873 = vsub.f32 %v843, %v857
        %v874 = vsub.f32 %v844, %v860
        %v875 = vsub.f32 %v845, %v863
        %v876 = vsub.f32 %v846, %v866
        %v877 = vsub.f32 %v847, %v870
        %v878 = vmul.f32 %v871, 1.442695
        %v879 = vpow.pop %v878
        %v880 = vmul.f32 %v872, 1.442695
        %v881 = vpow.pop %v880
        %v882 = vmul.f32 %v873, 1.442695
        %v883 = vpow.pop %v882
        %v884 = vmul.f32 %v874, 1.442695
        %v885 = vpow.pop %v884
        %v886 = vmul.f32 %v875, 1.442695
        %v887 = vpow.pop %v886
        %v888 = vmul.f32 %v876, 1.442695
        %v889 = vpow.pop %v888
        %v890 = vmul.f32 %v877, 1.442695
        %v891 = vpow.pop %v890
        %v892 = vsel %vm848, %v879, 0.0
        %893 = vadd.xlane.f32.xlu0 %v892
        %v894 = vpop.xlane.xlu0 %893
        %v895 = vsel %vm848, %v881, 0.0
        %896 = vadd.xlane.f32.xlu0 %v895
        %v897 = vpop.xlane.xlu0 %896
        %v898 = vsel %vm848, %v883, 0.0
        %899 = vadd.xlane.f32.xlu0 %v898
        %v900 = vpop.xlane.xlu0 %899
        %v901 = vsel %vm848, %v885, 0.0
        %902 = vadd.xlane.f32.xlu0 %v901
        %v903 = vpop.xlane.xlu0 %902
        %v904 = vsel %vm848, %v887, 0.0
        %905 = vadd.xlane.f32.xlu0 %v904
        %v906 = vpop.xlane.xlu0 %905
        %v907 = vsel %vm848, %v889, 0.0
        %908 = vadd.xlane.f32.xlu0 %v907
        %v909 = vpop.xlane.xlu0 %908
        %v910 = vsel %vm867, %v891, 0.0
        %911 = vadd.xlane.f32.xlu0 %v910
        %v912 = vpop.xlane.xlu0 %911
        %v913 = vrcp.pop %v894
        %v914 = vrcp.pop %v897
        %v915 = vrcp.pop %v900
        %v916 = vrcp.pop %v903
        %v917 = vrcp.pop %v906
        %v918 = vrcp.pop %v909
        %v919 = vrcp.pop %v912
        %v920 = vmul.f32 %v879, %v913
        %v921 = vmul.f32 %v881, %v914
        %v922 = vmul.f32 %v883, %v915
        %v923 = vmul.f32 %v885, %v916
        %v924 = vmul.f32 %v887, %v917
        %v925 = vmul.f32 %v889, %v918
        %v926 = vmul.f32 %v891, %v919
        %v928 = vsel %vm848, %v920, 0
        %v931 = vsel %vm848, %v921, 0
        %v934 = vsel %vm848, %v922, 0
        %v937 = vsel %vm848, %v923, 0
        %v940 = vsel %vm848, %v924, 0
        %v943 = vsel %vm848, %v925, 0
        %v946 = vsel %vm848, %v926, 0
        %vm948 = vcmask 1040384
        %v950 = vsel %vm948, %v697, 0
        %952 = vmatprep.subr.mxu0 0.0
        %953 = vmatpush1.msra.mxu0 0.0
        %954 = vmatprep.subr.mxu0 0.0
        %955 = vmatpush1.msra.mxu0 0.0
        %956 = vmatprep.subr.mxu0 0.0
        %957 = vmatpush1.msra.mxu0 0.0
        %958 = vmatprep.subr.mxu0 0.0
        %959 = vmatpush1.msra.mxu0 0.0
        %960 = vmatprep.subr.mxu0 0.0
        %961 = vmatpush1.msra.mxu0 0.0
        %962 = vmatprep.subr.mxu0 0.0
        %963 = vmatpush1.msra.mxu0 0.0
        %964 = vmatprep.subr.mxu0 0.0
        %965 = vmatpush1.msra.mxu0 0.0
        %966 = vmatprep.subr.mxu0 0.0
        %967 = vmatpush1.msra.mxu0 0.0
        %968 = vmatprep.subr.mxu0 0.0
        %969 = vmatpush1.msra.mxu0 0.0
        %970 = vmatprep.subr.mxu0 0.0
        %971 = vmatpush1.msra.mxu0 %v950
        %972 = vmatprep.subr.mxu0 0.0
        %973 = vmatpush1.msra.mxu0 %v696
        %974 = vmatprep.subr.mxu0 0.0
        %975 = vmatpush1.msra.mxu0 %v695
        %976 = vmatprep.subr.mxu0 0.0
        %977 = vmatpush1.msra.mxu0 %v694
        %978 = vmatprep.subr.mxu0 0.0
        %979 = vmatpush1.msra.mxu0 %v693
        %980 = vmatprep.subr.mxu0 0.0
        %981 = vmatpush1.msra.mxu0 %v692
        %982 = vmatprep.subr.mxu0 0.0
        %983 = vmatpush1.msra.mxu0 %v691
        %984 = vmatprep.subr.mxu0 0.0
        %985 = vmatpush2.msra.mxu0 0.0
        %986 = vmatprep.subr.mxu0 0.0
        %987 = vmatpush2.msra.mxu0 0.0
        %988 = vmatprep.subr.mxu0 0.0
        %989 = vmatpush2.msra.mxu0 0.0
        %990 = vmatprep.subr.mxu0 0.0
        %991 = vmatpush2.msra.mxu0 0.0
        %992 = vmatprep.subr.mxu0 0.0
        %993 = vmatpush2.msra.mxu0 0.0
        %994 = vmatprep.subr.mxu0 0.0
        %995 = vmatpush2.msra.mxu0 0.0
        %996 = vmatprep.subr.mxu0 0.0
        %997 = vmatpush2.msra.mxu0 0.0
        %998 = vmatprep.subr.mxu0 0.0
        %999 = vmatpush2.msra.mxu0 0.0
        %1000 = vmatprep.subr.mxu0 0.0
        %1001 = vmatpush2.msra.mxu0 0.0
        %1002 = vmatprep.subr.mxu0 0.0
        %1003 = vmatpush2.msra.mxu0 0.0
        %1004 = vmatprep.subr.mxu0 0.0
        %1005 = vmatpush2.msra.mxu0 0.0
        %1006 = vmatprep.subr.mxu0 0.0
        %1007 = vmatpush2.msra.mxu0 0.0
        %1008 = vmatprep.subr.mxu0 0.0
        %1009 = vmatpush2.msra.mxu0 0.0
        %1010 = vmatprep.subr.mxu0 0.0
        %1011 = vmatpush2.msra.mxu0 0.0
        %1012 = vmatprep.subr.mxu0 0.0
        %1013 = vmatpush2.msra.mxu0 0.0
        %1014 = vmatprep.subr.mxu0 0.0
        %1015 = vmatpush2.msra.mxu0 0.0
        %1016 = vmatprep.mubr.f32.mxu0 0.0
        %1017 = vmatmul.mubr.f32.gmra.mxu0 %v928
        %v1018 = vpop.f32.mrf.mxu0
        %v1019 = vadd.f32 0.0, %v1018
        %v1020 = vpop.f32.mrf.mxu0
        %1021 = vmatprep.mubr.f32.mxu0 0.0
        %1022 = vmatmul.mubr.f32.gmra.mxu0 %v931
        %v1023 = vpop.f32.mrf.mxu0
        %v1024 = vadd.f32 0.0, %v1023
        %v1025 = vpop.f32.mrf.mxu0
        %1026 = vmatprep.mubr.f32.mxu0 0.0
        %1027 = vmatmul.mubr.f32.gmra.mxu0 %v934
        %v1028 = vpop.f32.mrf.mxu0
        %v1029 = vadd.f32 0.0, %v1028
        %v1030 = vpop.f32.mrf.mxu0
        %1031 = vmatprep.mubr.f32.mxu0 0.0
        %1032 = vmatmul.mubr.f32.gmra.mxu0 %v937
        %v1033 = vpop.f32.mrf.mxu0
        %v1034 = vadd.f32 0.0, %v1033
        %v1035 = vpop.f32.mrf.mxu0
        %1036 = vmatprep.mubr.f32.mxu0 0.0
        %1037 = vmatmul.mubr.f32.gmra.mxu0 %v940
        %v1038 = vpop.f32.mrf.mxu0
        %v1039 = vadd.f32 0.0, %v1038
        %v1040 = vpop.f32.mrf.mxu0
        %1041 = vmatprep.mubr.f32.mxu0 0.0
        %1042 = vmatmul.mubr.f32.gmra.mxu0 %v943
        %v1043 = vpop.f32.mrf.mxu0
        %v1044 = vadd.f32 0.0, %v1043
        %v1045 = vpop.f32.mrf.mxu0
        %1046 = vmatprep.mubr.f32.mxu0 0.0
        %1047 = vmatmul.mubr.f32.gmra.mxu0 %v946
        %v1048 = vpop.f32.mrf.mxu0
        %v1049 = vadd.f32 0.0, %v1048
        %v1050 = vpop.f32.mrf.mxu0
        %1051 = vdwg.mxu0
        %1052 = vrot.lane.b32.xlu0 %v647, 96
        %v1053 = vpop.permute.xlu0 %1052
        %1054 = vrot.lane.b32.xlu0 %v648, 96
        %v1055 = vpop.permute.xlu0 %1054
        %1056 = vrot.lane.b32.xlu0 %v649, 96
        %v1057 = vpop.permute.xlu0 %1056
        %1058 = vrot.lane.b32.xlu0 %v650, 96
        %v1059 = vpop.permute.xlu0 %1058
        %1060 = vrot.lane.b32.xlu0 %v651, 96
        %v1061 = vpop.permute.xlu0 %1060
        %1062 = vrot.lane.b32.xlu0 %v652, 96
        %v1063 = vpop.permute.xlu0 %1062
        %1064 = vrot.lane.b32.xlu0 %v653, 96
        %v1065 = vpop.permute.xlu0 %1064
        %1066 = vrot.lane.b32.xlu0 %v669, 96
        %v1067 = vpop.permute.xlu0 %1066
        %1068 = vrot.lane.b32.xlu0 %v670, 96
        %v1069 = vpop.permute.xlu0 %1068
        %1070 = vrot.lane.b32.xlu0 %v671, 96
        %v1071 = vpop.permute.xlu0 %1070
        %1072 = vrot.lane.b32.xlu0 %v672, 96
        %v1073 = vpop.permute.xlu0 %1072
        %1074 = vrot.lane.b32.xlu0 %v673, 96
        %v1075 = vpop.permute.xlu0 %1074
        %1076 = vrot.lane.b32.xlu0 %v674, 96
        %v1077 = vpop.permute.xlu0 %1076
        %1078 = vrot.lane.b32.xlu0 %v675, 96
        %v1079 = vpop.permute.xlu0 %1078
        %v1080 = vsel %vm698, %v1053, 0
        %v1082 = vsel %vm698, %v1055, 0
        %v1084 = vsel %vm698, %v1057, 0
        %v1086 = vsel %vm698, %v1059, 0
        %v1088 = vsel %vm698, %v1061, 0
        %v1090 = vsel %vm698, %v1063, 0
        %v1092 = vsel %vm698, %v1065, 0
        %v1094 = vsel %vm698, %v1067, 0
        %v1096 = vsel %vm698, %v1069, 0
        %v1098 = vsel %vm698, %v1071, 0
        %v1100 = vsel %vm698, %v1073, 0
        %v1102 = vsel %vm698, %v1075, 0
        %v1104 = vsel %vm698, %v1077, 0
        %v1106 = vsel %vm698, %v1079, 0
        %1108 = vmatprep.subr.mxu0 0.0
        %1109 = vmatpush1.xpose.msra.mxu0 0.0
        %1110 = vmatprep.subr.mxu0 0.0
        %1111 = vmatpush1.xpose.msra.mxu0 0.0
        %1112 = vmatprep.subr.mxu0 0.0
        %1113 = vmatpush1.xpose.msra.mxu0 0.0
        %1114 = vmatprep.subr.mxu0 0.0
        %1115 = vmatpush1.xpose.msra.mxu0 0.0
        %1116 = vmatprep.subr.mxu0 0.0
        %1117 = vmatpush1.xpose.msra.mxu0 0.0
        %1118 = vmatprep.subr.mxu0 0.0
        %1119 = vmatpush1.xpose.msra.mxu0 0.0
        %1120 = vmatprep.subr.mxu0 0.0
        %1121 = vmatpush1.xpose.msra.mxu0 0.0
        %1122 = vmatprep.subr.mxu0 0.0
        %1123 = vmatpush1.xpose.msra.mxu0 0.0
        %1124 = vmatprep.subr.mxu0 0.0
        %1125 = vmatpush1.xpose.msra.mxu0 0.0
        %1126 = vmatprep.subr.mxu0 0.0
        %1127 = vmatpush1.xpose.msra.mxu0 %v1106
        %1128 = vmatprep.subr.mxu0 0.0
        %1129 = vmatpush1.xpose.msra.mxu0 %v1104
        %1130 = vmatprep.subr.mxu0 0.0
        %1131 = vmatpush1.xpose.msra.mxu0 %v1102
        %1132 = vmatprep.subr.mxu0 0.0
        %1133 = vmatpush1.xpose.msra.mxu0 %v1100
        %1134 = vmatprep.subr.mxu0 0.0
        %1135 = vmatpush1.xpose.msra.mxu0 %v1098
        %1136 = vmatprep.subr.mxu0 0.0
        %1137 = vmatpush1.xpose.msra.mxu0 %v1096
        %1138 = vmatprep.subr.mxu0 0.0
        %1139 = vmatpush1.xpose.msra.mxu0 %v1094
        %1140 = vmatprep.subr.mxu0 0.0
        %1141 = vmatpush2.xpose.msra.mxu0 0.0
        %1142 = vmatprep.subr.mxu0 0.0
        %1143 = vmatpush2.xpose.msra.mxu0 0.0
        %1144 = vmatprep.subr.mxu0 0.0
        %1145 = vmatpush2.xpose.msra.mxu0 0.0
        %1146 = vmatprep.subr.mxu0 0.0
        %1147 = vmatpush2.xpose.msra.mxu0 0.0
        %1148 = vmatprep.subr.mxu0 0.0
        %1149 = vmatpush2.xpose.msra.mxu0 0.0
        %1150 = vmatprep.subr.mxu0 0.0
        %1151 = vmatpush2.xpose.msra.mxu0 0.0
        %1152 = vmatprep.subr.mxu0 0.0
        %1153 = vmatpush2.xpose.msra.mxu0 0.0
        %1154 = vmatprep.subr.mxu0 0.0
        %1155 = vmatpush2.xpose.msra.mxu0 0.0
        %1156 = vmatprep.subr.mxu0 0.0
        %1157 = vmatpush2.xpose.msra.mxu0 0.0
        %1158 = vmatprep.subr.mxu0 0.0
        %1159 = vmatpush2.xpose.msra.mxu0 0.0
        %1160 = vmatprep.subr.mxu0 0.0
        %1161 = vmatpush2.xpose.msra.mxu0 0.0
        %1162 = vmatprep.subr.mxu0 0.0
        %1163 = vmatpush2.xpose.msra.mxu0 0.0
        %1164 = vmatprep.subr.mxu0 0.0
        %1165 = vmatpush2.xpose.msra.mxu0 0.0
        %1166 = vmatprep.subr.mxu0 0.0
        %1167 = vmatpush2.xpose.msra.mxu0 0.0
        %1168 = vmatprep.subr.mxu0 0.0
        %1169 = vmatpush2.xpose.msra.mxu0 0.0
        %1170 = vmatprep.subr.mxu0 0.0
        %1171 = vmatpush2.xpose.msra.mxu0 0.0
        %1172 = vmatprep.mubr.f32.mxu0 0.0
        %1173 = vmatmul.mubr.f32.gmra.mxu0 %v1080
        %v1174 = vpop.f32.mrf.mxu0
        %v1175 = vadd.f32 0.0, %v1174
        %v1176 = vpop.f32.mrf.mxu0
        %1177 = vmatprep.mubr.f32.mxu0 0.0
        %1178 = vmatmul.mubr.f32.gmra.mxu0 %v1082
        %v1179 = vpop.f32.mrf.mxu0
        %v1180 = vadd.f32 0.0, %v1179
        %v1181 = vpop.f32.mrf.mxu0
        %1182 = vmatprep.mubr.f32.mxu0 0.0
        %1183 = vmatmul.mubr.f32.gmra.mxu0 %v1084
        %v1184 = vpop.f32.mrf.mxu0
        %v1185 = vadd.f32 0.0, %v1184
        %v1186 = vpop.f32.mrf.mxu0
        %1187 = vmatprep.mubr.f32.mxu0 0.0
        %1188 = vmatmul.mubr.f32.gmra.mxu0 %v1086
        %v1189 = vpop.f32.mrf.mxu0
        %v1190 = vadd.f32 0.0, %v1189
        %v1191 = vpop.f32.mrf.mxu0
        %1192 = vmatprep.mubr.f32.mxu0 0.0
        %1193 = vmatmul.mubr.f32.gmra.mxu0 %v1088
        %v1194 = vpop.f32.mrf.mxu0
        %v1195 = vadd.f32 0.0, %v1194
        %v1196 = vpop.f32.mrf.mxu0
        %1197 = vmatprep.mubr.f32.mxu0 0.0
        %1198 = vmatmul.mubr.f32.gmra.mxu0 %v1090
        %v1199 = vpop.f32.mrf.mxu0
        %v1200 = vadd.f32 0.0, %v1199
        %v1201 = vpop.f32.mrf.mxu0
        %1202 = vmatprep.mubr.f32.mxu0 0.0
        %1203 = vmatmul.mubr.f32.gmra.mxu0 %v1092
        %v1204 = vpop.f32.mrf.mxu0
        %v1205 = vadd.f32 0.0, %v1204
        %v1206 = vpop.f32.mrf.mxu0
        %1207 = vdwg.mxu0
        %v1208 = vmul.f32 %v1175, 0.17677669
        %v1209 = vmul.f32 %v1180, 0.17677669
        %v1210 = vmul.f32 %v1185, 0.17677669
        %v1211 = vmul.f32 %v1190, 0.17677669
        %v1212 = vmul.f32 %v1195, 0.17677669
        %v1213 = vmul.f32 %v1200, 0.17677669
        %v1214 = vmul.f32 %v1205, 0.17677669
        %v1215 = vsel %vm848, %v1208, -inf
        %1216 = vmax.xlane.f32.xlu0 %v1215
        %v1217 = vpop.xlane.xlu0 %1216
        %v1218 = vsel %vm848, %v1209, -inf
        %1219 = vmax.xlane.f32.xlu0 %v1218
        %v1220 = vpop.xlane.xlu0 %1219
        %v1221 = vsel %vm848, %v1210, -inf
        %1222 = vmax.xlane.f32.xlu0 %v1221
        %v1223 = vpop.xlane.xlu0 %1222
        %v1224 = vsel %vm848, %v1211, -inf
        %1225 = vmax.xlane.f32.xlu0 %v1224
        %v1226 = vpop.xlane.xlu0 %1225
        %v1227 = vsel %vm848, %v1212, -inf
        %1228 = vmax.xlane.f32.xlu0 %v1227
        %v1229 = vpop.xlane.xlu0 %1228
        %v1230 = vsel %vm848, %v1213, -inf
        %1231 = vmax.xlane.f32.xlu0 %v1230
        %v1232 = vpop.xlane.xlu0 %1231
        %v1233 = vsel %vm867, %v1214, -inf
        %1234 = vmax.xlane.f32.xlu0 %v1233
        %v1235 = vpop.xlane.xlu0 %1234
        %v1236 = vsub.f32 %v1208, %v1217
        %v1237 = vsub.f32 %v1209, %v1220
        %v1238 = vsub.f32 %v1210, %v1223
        %v1239 = vsub.f32 %v1211, %v1226
        %v1240 = vsub.f32 %v1212, %v1229
        %v1241 = vsub.f32 %v1213, %v1232
        %v1242 = vsub.f32 %v1214, %v1235
        %v1243 = vmul.f32 %v1236, 1.442695
        %v1244 = vpow.pop %v1243
        %v1245 = vmul.f32 %v1237, 1.442695
        %v1246 = vpow.pop %v1245
        %v1247 = vmul.f32 %v1238, 1.442695
        %v1248 = vpow.pop %v1247
        %v1249 = vmul.f32 %v1239, 1.442695
        %v1250 = vpow.pop %v1249
        %v1251 = vmul.f32 %v1240, 1.442695
        %v1252 = vpow.pop %v1251
        %v1253 = vmul.f32 %v1241, 1.442695
        %v1254 = vpow.pop %v1253
        %v1255 = vmul.f32 %v1242, 1.442695
        %v1256 = vpow.pop %v1255
        %v1257 = vsel %vm848, %v1244, 0.0
        %1258 = vadd.xlane.f32.xlu0 %v1257
        %v1259 = vpop.xlane.xlu0 %1258
        %v1260 = vsel %vm848, %v1246, 0.0
        %1261 = vadd.xlane.f32.xlu0 %v1260
        %v1262 = vpop.xlane.xlu0 %1261
        %v1263 = vsel %vm848, %v1248, 0.0
        %1264 = vadd.xlane.f32.xlu0 %v1263
        %v1265 = vpop.xlane.xlu0 %1264
        %v1266 = vsel %vm848, %v1250, 0.0
        %1267 = vadd.xlane.f32.xlu0 %v1266
        %v1268 = vpop.xlane.xlu0 %1267
        %v1269 = vsel %vm848, %v1252, 0.0
        %1270 = vadd.xlane.f32.xlu0 %v1269
        %v1271 = vpop.xlane.xlu0 %1270
        %v1272 = vsel %vm848, %v1254, 0.0
        %1273 = vadd.xlane.f32.xlu0 %v1272
        %v1274 = vpop.xlane.xlu0 %1273
        %v1275 = vsel %vm867, %v1256, 0.0
        %1276 = vadd.xlane.f32.xlu0 %v1275
        %v1277 = vpop.xlane.xlu0 %1276
        %v1278 = vrcp.pop %v1259
        %v1279 = vrcp.pop %v1262
        %v1280 = vrcp.pop %v1265
        %v1281 = vrcp.pop %v1268
        %v1282 = vrcp.pop %v1271
        %v1283 = vrcp.pop %v1274
        %v1284 = vrcp.pop %v1277
        %v1285 = vmul.f32 %v1244, %v1278
        %v1286 = vmul.f32 %v1246, %v1279
        %v1287 = vmul.f32 %v1248, %v1280
        %v1288 = vmul.f32 %v1250, %v1281
        %v1289 = vmul.f32 %v1252, %v1282
        %v1290 = vmul.f32 %v1254, %v1283
        %v1291 = vmul.f32 %v1256, %v1284
        %1298 = vrot.lane.b32.xlu0 %v691, 96
        %v1299 = vpop.permute.xlu0 %1298
        %1300 = vrot.lane.b32.xlu0 %v692, 96
        %v1301 = vpop.permute.xlu0 %1300
        %1302 = vrot.lane.b32.xlu0 %v693, 96
        %v1303 = vpop.permute.xlu0 %1302
        %1304 = vrot.lane.b32.xlu0 %v694, 96
        %v1305 = vpop.permute.xlu0 %1304
        %1306 = vrot.lane.b32.xlu0 %v695, 96
        %v1307 = vpop.permute.xlu0 %1306
        %1308 = vrot.lane.b32.xlu0 %v696, 96
        %v1309 = vpop.permute.xlu0 %1308
        %1310 = vrot.lane.b32.xlu0 %v697, 96
        %v1311 = vpop.permute.xlu0 %1310
        %v1319 = vsel %vm848, %v1285, 0
        %v1322 = vsel %vm848, %v1286, 0
        %v1325 = vsel %vm848, %v1287, 0
        %v1328 = vsel %vm848, %v1288, 0
        %v1331 = vsel %vm848, %v1289, 0
        %v1334 = vsel %vm848, %v1290, 0
        %v1337 = vsel %vm848, %v1291, 0
        %v1339 = vsel %vm948, %v1311, 0
        %1341 = vmatprep.subr.mxu0 0.0
        %1342 = vmatpush1.msra.mxu0 0.0
        %1343 = vmatprep.subr.mxu0 0.0
        %1344 = vmatpush1.msra.mxu0 0.0
        %1345 = vmatprep.subr.mxu0 0.0
        %1346 = vmatpush1.msra.mxu0 0.0
        %1347 = vmatprep.subr.mxu0 0.0
        %1348 = vmatpush1.msra.mxu0 0.0
        %1349 = vmatprep.subr.mxu0 0.0
        %1350 = vmatpush1.msra.mxu0 0.0
        %1351 = vmatprep.subr.mxu0 0.0
        %1352 = vmatpush1.msra.mxu0 0.0
        %1353 = vmatprep.subr.mxu0 0.0
        %1354 = vmatpush1.msra.mxu0 0.0
        %1355 = vmatprep.subr.mxu0 0.0
        %1356 = vmatpush1.msra.mxu0 0.0
        %1357 = vmatprep.subr.mxu0 0.0
        %1358 = vmatpush1.msra.mxu0 0.0
        %1359 = vmatprep.subr.mxu0 0.0
        %1360 = vmatpush1.msra.mxu0 %v1339
        %1361 = vmatprep.subr.mxu0 0.0
        %1362 = vmatpush1.msra.mxu0 %v1309
        %1363 = vmatprep.subr.mxu0 0.0
        %1364 = vmatpush1.msra.mxu0 %v1307
        %1365 = vmatprep.subr.mxu0 0.0
        %1366 = vmatpush1.msra.mxu0 %v1305
        %1367 = vmatprep.subr.mxu0 0.0
        %1368 = vmatpush1.msra.mxu0 %v1303
        %1369 = vmatprep.subr.mxu0 0.0
        %1370 = vmatpush1.msra.mxu0 %v1301
        %1371 = vmatprep.subr.mxu0 0.0
        %1372 = vmatpush1.msra.mxu0 %v1299
        %1373 = vmatprep.subr.mxu0 0.0
        %1374 = vmatpush2.msra.mxu0 0.0
        %1375 = vmatprep.subr.mxu0 0.0
        %1376 = vmatpush2.msra.mxu0 0.0
        %1377 = vmatprep.subr.mxu0 0.0
        %1378 = vmatpush2.msra.mxu0 0.0
        %1379 = vmatprep.subr.mxu0 0.0
        %1380 = vmatpush2.msra.mxu0 0.0
        %1381 = vmatprep.subr.mxu0 0.0
        %1382 = vmatpush2.msra.mxu0 0.0
        %1383 = vmatprep.subr.mxu0 0.0
        %1384 = vmatpush2.msra.mxu0 0.0
        %1385 = vmatprep.subr.mxu0 0.0
        %1386 = vmatpush2.msra.mxu0 0.0
        %1387 = vmatprep.subr.mxu0 0.0
        %1388 = vmatpush2.msra.mxu0 0.0
        %1389 = vmatprep.subr.mxu0 0.0
        %1390 = vmatpush2.msra.mxu0 0.0
        %1391 = vmatprep.subr.mxu0 0.0
        %1392 = vmatpush2.msra.mxu0 0.0
        %1393 = vmatprep.subr.mxu0 0.0
        %1394 = vmatpush2.msra.mxu0 0.0
        %1395 = vmatprep.subr.mxu0 0.0
        %1396 = vmatpush2.msra.mxu0 0.0
        %1397 = vmatprep.subr.mxu0 0.0
        %1398 = vmatpush2.msra.mxu0 0.0
        %1399 = vmatprep.subr.mxu0 0.0
        %1400 = vmatpush2.msra.mxu0 0.0
        %1401 = vmatprep.subr.mxu0 0.0
        %1402 = vmatpush2.msra.mxu0 0.0
        %1403 = vmatprep.subr.mxu0 0.0
        %1404 = vmatpush2.msra.mxu0 0.0
        %1405 = vmatprep.mubr.f32.mxu0 0.0
        %1406 = vmatmul.mubr.f32.gmra.mxu0 %v1319
        %v1407 = vpop.f32.mrf.mxu0
        %v1408 = vadd.f32 0.0, %v1407
        %v1409 = vpop.f32.mrf.mxu0
        %1410 = vmatprep.mubr.f32.mxu0 0.0
        %1411 = vmatmul.mubr.f32.gmra.mxu0 %v1322
        %v1412 = vpop.f32.mrf.mxu0
        %v1413 = vadd.f32 0.0, %v1412
        %v1414 = vpop.f32.mrf.mxu0
        %1415 = vmatprep.mubr.f32.mxu0 0.0
        %1416 = vmatmul.mubr.f32.gmra.mxu0 %v1325
        %v1417 = vpop.f32.mrf.mxu0
        %v1418 = vadd.f32 0.0, %v1417
        %v1419 = vpop.f32.mrf.mxu0
        %1420 = vmatprep.mubr.f32.mxu0 0.0
        %1421 = vmatmul.mubr.f32.gmra.mxu0 %v1328
        %v1422 = vpop.f32.mrf.mxu0
        %v1423 = vadd.f32 0.0, %v1422
        %v1424 = vpop.f32.mrf.mxu0
        %1425 = vmatprep.mubr.f32.mxu0 0.0
        %1426 = vmatmul.mubr.f32.gmra.mxu0 %v1331
        %v1427 = vpop.f32.mrf.mxu0
        %v1428 = vadd.f32 0.0, %v1427
        %v1429 = vpop.f32.mrf.mxu0
        %1430 = vmatprep.mubr.f32.mxu0 0.0
        %1431 = vmatmul.mubr.f32.gmra.mxu0 %v1334
        %v1432 = vpop.f32.mrf.mxu0
        %v1433 = vadd.f32 0.0, %v1432
        %v1434 = vpop.f32.mrf.mxu0
        %1435 = vmatprep.mubr.f32.mxu0 0.0
        %1436 = vmatmul.mubr.f32.gmra.mxu0 %v1337
        %v1437 = vpop.f32.mrf.mxu0
        %v1438 = vadd.f32 0.0, %v1437
        %v1439 = vpop.f32.mrf.mxu0
        %1440 = vdwg.mxu0
        %v1442 = vsel %vm698, %v1408, 0
        %v1445 = vsel %vm698, %v1413, 0
        %v1448 = vsel %vm698, %v1418, 0
        %v1451 = vsel %vm698, %v1423, 0
        %v1454 = vsel %vm698, %v1428, 0
        %v1457 = vsel %vm698, %v1433, 0
        %v1460 = vsel %vm698, %v1438, 0
        %1462 = vmatprep.subr.mxu0 0.0
        %1463 = vmatpush1.msra.mxu0 0.0
        %1464 = vmatprep.subr.mxu0 0.0
        %1465 = vmatpush1.msra.mxu0 0.0
        %1466 = vmatprep.subr.mxu0 0.0
        %1467 = vmatpush1.msra.mxu0 0.0
        %1468 = vmatprep.subr.mxu0 0.0
        %1469 = vmatpush1.msra.mxu0 0.0
        %1470 = vmatprep.subr.mxu0 0.0
        %1471 = vmatpush1.msra.mxu0 0.0
        %1472 = vmatprep.subr.mxu0 0.0
        %1473 = vmatpush1.msra.mxu0 0.0
        %1474 = vmatprep.subr.mxu0 0.0
        %1475 = vmatpush1.msra.mxu0 0.0
        %1476 = vmatprep.subr.mxu0 0.0
        %1477 = vmatpush1.msra.mxu0 0.0
        %1478 = vmatprep.subr.mxu0 0.0
        %1479 = vmatpush1.msra.mxu0 0.0
        %1480 = vmatprep.subr.mxu0 0.0
        %1481 = vmatpush1.msra.mxu0 0.0
        %1482 = vmatprep.subr.mxu0 0.0
        %1483 = vmatpush1.msra.mxu0 0.0
        %1484 = vmatprep.subr.mxu0 0.0
        %1485 = vmatpush1.msra.mxu0 0.0
        %1486 = vmatprep.subr.mxu0 0.0
        %1487 = vmatpush1.msra.mxu0 %v360
        %1488 = vmatprep.subr.mxu0 0.0
        %1489 = vmatpush1.msra.mxu0 %v359
        %1490 = vmatprep.subr.mxu0 0.0
        %1491 = vmatpush1.msra.mxu0 %v358
        %1492 = vmatprep.subr.mxu0 0.0
        %1493 = vmatpush1.msra.mxu0 %v357
        %1494 = vmatprep.subr.mxu0 0.0
        %1495 = vmatpush2.msra.mxu0 0.0
        %1496 = vmatprep.subr.mxu0 0.0
        %1497 = vmatpush2.msra.mxu0 0.0
        %1498 = vmatprep.subr.mxu0 0.0
        %1499 = vmatpush2.msra.mxu0 0.0
        %1500 = vmatprep.subr.mxu0 0.0
        %1501 = vmatpush2.msra.mxu0 0.0
        %1502 = vmatprep.subr.mxu0 0.0
        %1503 = vmatpush2.msra.mxu0 0.0
        %1504 = vmatprep.subr.mxu0 0.0
        %1505 = vmatpush2.msra.mxu0 0.0
        %1506 = vmatprep.subr.mxu0 0.0
        %1507 = vmatpush2.msra.mxu0 0.0
        %1508 = vmatprep.subr.mxu0 0.0
        %1509 = vmatpush2.msra.mxu0 0.0
        %1510 = vmatprep.subr.mxu0 0.0
        %1511 = vmatpush2.msra.mxu0 0.0
        %1512 = vmatprep.subr.mxu0 0.0
        %1513 = vmatpush2.msra.mxu0 0.0
        %1514 = vmatprep.subr.mxu0 0.0
        %1515 = vmatpush2.msra.mxu0 0.0
        %1516 = vmatprep.subr.mxu0 0.0
        %1517 = vmatpush2.msra.mxu0 0.0
        %1518 = vmatprep.subr.mxu0 0.0
        %1519 = vmatpush2.msra.mxu0 0.0
        %1520 = vmatprep.subr.mxu0 0.0
        %1521 = vmatpush2.msra.mxu0 0.0
        %1522 = vmatprep.subr.mxu0 0.0
        %1523 = vmatpush2.msra.mxu0 0.0
        %1524 = vmatprep.subr.mxu0 0.0
        %1525 = vmatpush2.msra.mxu0 0.0
        %1526 = vmatprep.mubr.f32.mxu0 0.0
        %1527 = vmatmul.mubr.f32.gmra.mxu0 %v1442
        %v1528 = vpop.f32.mrf.mxu0
        %v1529 = vadd.f32 0.0, %v1528
        %v1530 = vpop.f32.mrf.mxu0
        %1531 = vmatprep.mubr.f32.mxu0 0.0
        %1532 = vmatmul.mubr.f32.gmra.mxu0 %v1445
        %v1533 = vpop.f32.mrf.mxu0
        %v1534 = vadd.f32 0.0, %v1533
        %v1535 = vpop.f32.mrf.mxu0
        %1536 = vmatprep.mubr.f32.mxu0 0.0
        %1537 = vmatmul.mubr.f32.gmra.mxu0 %v1448
        %v1538 = vpop.f32.mrf.mxu0
        %v1539 = vadd.f32 0.0, %v1538
        %v1540 = vpop.f32.mrf.mxu0
        %1541 = vmatprep.mubr.f32.mxu0 0.0
        %1542 = vmatmul.mubr.f32.gmra.mxu0 %v1451
        %v1543 = vpop.f32.mrf.mxu0
        %v1544 = vadd.f32 0.0, %v1543
        %v1545 = vpop.f32.mrf.mxu0
        %1546 = vmatprep.mubr.f32.mxu0 0.0
        %1547 = vmatmul.mubr.f32.gmra.mxu0 %v1454
        %v1548 = vpop.f32.mrf.mxu0
        %v1549 = vadd.f32 0.0, %v1548
        %v1550 = vpop.f32.mrf.mxu0
        %1551 = vmatprep.mubr.f32.mxu0 0.0
        %1552 = vmatmul.mubr.f32.gmra.mxu0 %v1457
        %v1553 = vpop.f32.mrf.mxu0
        %v1554 = vadd.f32 0.0, %v1553
        %v1555 = vpop.f32.mrf.mxu0
        %1556 = vmatprep.mubr.f32.mxu0 0.0
        %1557 = vmatmul.mubr.f32.gmra.mxu0 %v1460
        %v1558 = vpop.f32.mrf.mxu0
        %v1559 = vadd.f32 0.0, %v1558
        %v1560 = vpop.f32.mrf.mxu0
        %1561 = vdwg.mxu0
        %v1563 = vsel %vm698, %v1019, 0
        %v1566 = vsel %vm698, %v1024, 0
        %v1569 = vsel %vm698, %v1029, 0
        %v1572 = vsel %vm698, %v1034, 0
        %v1575 = vsel %vm698, %v1039, 0
        %v1578 = vsel %vm698, %v1044, 0
        %v1581 = vsel %vm698, %v1049, 0
        %1583 = vmatprep.subr.mxu0 0.0
        %1584 = vmatpush1.msra.mxu0 0.0
        %1585 = vmatprep.subr.mxu0 0.0
        %1586 = vmatpush1.msra.mxu0 0.0
        %1587 = vmatprep.subr.mxu0 0.0
        %1588 = vmatpush1.msra.mxu0 0.0
        %1589 = vmatprep.subr.mxu0 0.0
        %1590 = vmatpush1.msra.mxu0 0.0
        %1591 = vmatprep.subr.mxu0 0.0
        %1592 = vmatpush1.msra.mxu0 0.0
        %1593 = vmatprep.subr.mxu0 0.0
        %1594 = vmatpush1.msra.mxu0 0.0
        %1595 = vmatprep.subr.mxu0 0.0
        %1596 = vmatpush1.msra.mxu0 0.0
        %1597 = vmatprep.subr.mxu0 0.0
        %1598 = vmatpush1.msra.mxu0 0.0
        %1599 = vmatprep.subr.mxu0 0.0
        %1600 = vmatpush1.msra.mxu0 0.0
        %1601 = vmatprep.subr.mxu0 0.0
        %1602 = vmatpush1.msra.mxu0 0.0
        %1603 = vmatprep.subr.mxu0 0.0
        %1604 = vmatpush1.msra.mxu0 0.0
        %1605 = vmatprep.subr.mxu0 0.0
        %1606 = vmatpush1.msra.mxu0 0.0
        %1607 = vmatprep.subr.mxu0 0.0
        %1608 = vmatpush1.msra.mxu0 %v356
        %1609 = vmatprep.subr.mxu0 0.0
        %1610 = vmatpush1.msra.mxu0 %v355
        %1611 = vmatprep.subr.mxu0 0.0
        %1612 = vmatpush1.msra.mxu0 %v354
        %1613 = vmatprep.subr.mxu0 0.0
        %1614 = vmatpush1.msra.mxu0 %v353
        %1615 = vmatprep.subr.mxu0 0.0
        %1616 = vmatpush2.msra.mxu0 0.0
        %1617 = vmatprep.subr.mxu0 0.0
        %1618 = vmatpush2.msra.mxu0 0.0
        %1619 = vmatprep.subr.mxu0 0.0
        %1620 = vmatpush2.msra.mxu0 0.0
        %1621 = vmatprep.subr.mxu0 0.0
        %1622 = vmatpush2.msra.mxu0 0.0
        %1623 = vmatprep.subr.mxu0 0.0
        %1624 = vmatpush2.msra.mxu0 0.0
        %1625 = vmatprep.subr.mxu0 0.0
        %1626 = vmatpush2.msra.mxu0 0.0
        %1627 = vmatprep.subr.mxu0 0.0
        %1628 = vmatpush2.msra.mxu0 0.0
        %1629 = vmatprep.subr.mxu0 0.0
        %1630 = vmatpush2.msra.mxu0 0.0
        %1631 = vmatprep.subr.mxu0 0.0
        %1632 = vmatpush2.msra.mxu0 0.0
        %1633 = vmatprep.subr.mxu0 0.0
        %1634 = vmatpush2.msra.mxu0 0.0
        %1635 = vmatprep.subr.mxu0 0.0
        %1636 = vmatpush2.msra.mxu0 0.0
        %1637 = vmatprep.subr.mxu0 0.0
        %1638 = vmatpush2.msra.mxu0 0.0
        %1639 = vmatprep.subr.mxu0 0.0
        %1640 = vmatpush2.msra.mxu0 0.0
        %1641 = vmatprep.subr.mxu0 0.0
        %1642 = vmatpush2.msra.mxu0 0.0
        %1643 = vmatprep.subr.mxu0 0.0
        %1644 = vmatpush2.msra.mxu0 0.0
        %1645 = vmatprep.subr.mxu0 0.0
        %1646 = vmatpush2.msra.mxu0 0.0
        %1647 = vmatprep.mubr.f32.mxu0 0.0
        %1648 = vmatmul.mubr.f32.gmra.mxu0 %v1563
        %v1649 = vpop.f32.mrf.mxu0
        %v1650 = vadd.f32 %v1529, %v1649
        %v1651 = vpop.f32.mrf.mxu0
        %1652 = vmatprep.mubr.f32.mxu0 0.0
        %1653 = vmatmul.mubr.f32.gmra.mxu0 %v1566
        %v1654 = vpop.f32.mrf.mxu0
        %v1655 = vadd.f32 %v1534, %v1654
        %v1656 = vpop.f32.mrf.mxu0
        %1657 = vmatprep.mubr.f32.mxu0 0.0
        %1658 = vmatmul.mubr.f32.gmra.mxu0 %v1569
        %v1659 = vpop.f32.mrf.mxu0
        %v1660 = vadd.f32 %v1539, %v1659
        %v1661 = vpop.f32.mrf.mxu0
        %1662 = vmatprep.mubr.f32.mxu0 0.0
        %1663 = vmatmul.mubr.f32.gmra.mxu0 %v1572
        %v1664 = vpop.f32.mrf.mxu0
        %v1665 = vadd.f32 %v1544, %v1664
        %v1666 = vpop.f32.mrf.mxu0
        %1667 = vmatprep.mubr.f32.mxu0 0.0
        %1668 = vmatmul.mubr.f32.gmra.mxu0 %v1575
        %v1669 = vpop.f32.mrf.mxu0
        %v1670 = vadd.f32 %v1549, %v1669
        %v1671 = vpop.f32.mrf.mxu0
        %1672 = vmatprep.mubr.f32.mxu0 0.0
        %1673 = vmatmul.mubr.f32.gmra.mxu0 %v1578
        %v1674 = vpop.f32.mrf.mxu0
        %v1675 = vadd.f32 %v1554, %v1674
        %v1676 = vpop.f32.mrf.mxu0
        %1677 = vmatprep.mubr.f32.mxu0 0.0
        %1678 = vmatmul.mubr.f32.gmra.mxu0 %v1581
        %v1679 = vpop.f32.mrf.mxu0
        %v1680 = vadd.f32 %v1559, %v1679
        %v1681 = vpop.f32.mrf.mxu0
        %1682 = vdwg.mxu0
        %v1683 = vsel %vm538, %v1650, 0.0
        %1684 = vadd.xlane.f32.xlu0 %v1683
        %v1685 = vpop.xlane.xlu0 %1684
        %v1686 = vsel %vm538, %v1655, 0.0
        %1687 = vadd.xlane.f32.xlu0 %v1686
        %v1688 = vpop.xlane.xlu0 %1687
        %v1689 = vsel %vm538, %v1660, 0.0
        %1690 = vadd.xlane.f32.xlu0 %v1689
        %v1691 = vpop.xlane.xlu0 %1690
        %v1692 = vsel %vm538, %v1665, 0.0
        %1693 = vadd.xlane.f32.xlu0 %v1692
        %v1694 = vpop.xlane.xlu0 %1693
        %v1695 = vsel %vm538, %v1670, 0.0
        %1696 = vadd.xlane.f32.xlu0 %v1695
        %v1697 = vpop.xlane.xlu0 %1696
        %v1698 = vsel %vm538, %v1675, 0.0
        %1699 = vadd.xlane.f32.xlu0 %v1698
        %v1700 = vpop.xlane.xlu0 %1699
        %v1701 = vsel %vm557, %v1680, 0.0
        %1702 = vadd.xlane.f32.xlu0 %v1701
        %v1703 = vpop.xlane.xlu0 %1702
        %v1704 = vmul.f32 %v1685, %v561
        %v1705 = vmul.f32 %v1688, %v561
        %v1706 = vmul.f32 %v1691, %v561
        %v1707 = vmul.f32 %v1694, %v561
        %v1708 = vmul.f32 %v1697, %v561
        %v1709 = vmul.f32 %v1700, %v561
        %v1710 = vmul.f32 %v1703, %v561
        %v1711 = vsub.f32 %v1650, %v1704
        %v1712 = vsub.f32 %v1655, %v1705
        %v1713 = vsub.f32 %v1660, %v1706
        %v1714 = vsub.f32 %v1665, %v1707
        %v1715 = vsub.f32 %v1670, %v1708
        %v1716 = vsub.f32 %v1675, %v1709
        %v1717 = vsub.f32 %v1680, %v1710
        %v1718 = vmul.f32 %v1711, %v1711
        %v1719 = vmul.f32 %v1712, %v1712
        %v1720 = vmul.f32 %v1713, %v1713
        %v1721 = vmul.f32 %v1714, %v1714
        %v1722 = vmul.f32 %v1715, %v1715
        %v1723 = vmul.f32 %v1716, %v1716
        %v1724 = vmul.f32 %v1717, %v1717
        %v1725 = vsel %vm538, %v1718, 0.0
        %1726 = vadd.xlane.f32.xlu0 %v1725
        %v1727 = vpop.xlane.xlu0 %1726
        %v1728 = vsel %vm538, %v1719, 0.0
        %1729 = vadd.xlane.f32.xlu0 %v1728
        %v1730 = vpop.xlane.xlu0 %1729
        %v1731 = vsel %vm538, %v1720, 0.0
        %1732 = vadd.xlane.f32.xlu0 %v1731
        %v1733 = vpop.xlane.xlu0 %1732
        %v1734 = vsel %vm538, %v1721, 0.0
        %1735 = vadd.xlane.f32.xlu0 %v1734
        %v1736 = vpop.xlane.xlu0 %1735
        %v1737 = vsel %vm538, %v1722, 0.0
        %1738 = vadd.xlane.f32.xlu0 %v1737
        %v1739 = vpop.xlane.xlu0 %1738
        %v1740 = vsel %vm538, %v1723, 0.0
        %1741 = vadd.xlane.f32.xlu0 %v1740
        %v1742 = vpop.xlane.xlu0 %1741
        %v1743 = vsel %vm557, %v1724, 0.0
        %1744 = vadd.xlane.f32.xlu0 %v1743
        %v1745 = vpop.xlane.xlu0 %1744
        %v1746 = vmul.f32 %v1727, %v561
        %v1747 = vmul.f32 %v1730, %v561
        %v1748 = vmul.f32 %v1733, %v561
        %v1749 = vmul.f32 %v1736, %v561
        %v1750 = vmul.f32 %v1739, %v561
        %v1751 = vmul.f32 %v1742, %v561
        %v1752 = vmul.f32 %v1745, %v561
        %v1753 = vadd.f32 %v1746, 1e-06
        %v1754 = vadd.f32 %v1747, 1e-06
        %v1755 = vadd.f32 %v1748, 1e-06
        %v1756 = vadd.f32 %v1749, 1e-06
        %v1757 = vadd.f32 %v1750, 1e-06
        %v1758 = vadd.f32 %v1751, 1e-06
        %v1759 = vadd.f32 %v1752, 1e-06
        %v1760 = vrsqrt.pop %v1753
        %v1761 = vrsqrt.pop %v1754
        %v1762 = vrsqrt.pop %v1755
        %v1763 = vrsqrt.pop %v1756
        %v1764 = vrsqrt.pop %v1757
        %v1765 = vrsqrt.pop %v1758
        %v1766 = vrsqrt.pop %v1759
        %v1767 = vmul.f32 %v1711, %v1760
        %v1768 = vmul.f32 %v1712, %v1761
        %v1769 = vmul.f32 %v1713, %v1762
        %v1770 = vmul.f32 %v1714, %v1763
        %v1771 = vmul.f32 %v1715, %v1764
        %v1772 = vmul.f32 %v1716, %v1765
        %v1773 = vmul.f32 %v1717, %v1766
        %v1775 = vlaneseq
        %v1776 = vshrl.u32 %v1775, 7
        %v1777 = vsub.s32 0, %v1776
        %v1778 = vrot.slane %v367, %v1777
        %v1780 = vmul.f32 %v1767, %v1778
        %v1781 = vmul.f32 %v1768, %v1778
        %v1782 = vmul.f32 %v1769, %v1778
        %v1783 = vmul.f32 %v1770, %v1778
        %v1784 = vmul.f32 %v1771, %v1778
        %v1785 = vmul.f32 %v1772, %v1778
        %v1786 = vmul.f32 %v1773, %v1778
        %v1788 = vlaneseq
        %v1789 = vshrl.u32 %v1788, 7
        %v1790 = vsub.s32 0, %v1789
        %v1791 = vrot.slane %v368, %v1790
        %v1793 = vadd.f32 %v1780, %v1791
        %v1794 = vadd.f32 %v1781, %v1791
        %v1795 = vadd.f32 %v1782, %v1791
        %v1796 = vadd.f32 %v1783, %v1791
        %v1797 = vadd.f32 %v1784, %v1791
        %v1798 = vadd.f32 %v1785, %v1791
        %v1799 = vadd.f32 %v1786, %v1791
        %1800 = vxpose.xlu0.b32.start [1/16] %v1793, 128
        %1801 = vxpose.xlu0.b32.cont [2/16] %v1794, 128
        %1802 = vxpose.xlu0.b32.cont [3/16] %v1795, 128
        %1803 = vxpose.xlu0.b32.cont [4/16] %v1796, 128
        %1804 = vxpose.xlu0.b32.cont [5/16] %v1797, 128
        %1805 = vxpose.xlu0.b32.cont [6/16] %v1798, 128
        %1806 = vxpose.xlu0.b32.cont [7/16] %v1799, 128
        %1807 = vxpose.xlu0.b32.cont [8/16] 0.0, 128
        %1808 = vxpose.xlu0.b32.cont [9/16] 0.0, 128
        %1809 = vxpose.xlu0.b32.cont [10/16] 0.0, 128
        %1810 = vxpose.xlu0.b32.cont [11/16] 0.0, 128
        %1811 = vxpose.xlu0.b32.cont [12/16] 0.0, 128
        %1812 = vxpose.xlu0.b32.cont [13/16] 0.0, 128
        %1813 = vxpose.xlu0.b32.cont [14/16] 0.0, 128
        %1814 = vxpose.xlu0.b32.cont [15/16] 0.0, 128
        %1815 = vxpose.xlu0.b32.end [16/16] 0.0, 128
        %v1816 = vpop.trf.xlu0
        %v1817 = vpop.trf.xlu0
        %v1818 = vpop.trf.xlu0
        %v1819 = vpop.trf.xlu0
        %v1820 = vpop.trf.xlu0
        %v1821 = vpop.trf.xlu0
        %v1822 = vpop.trf.xlu0
        %v1823 = vpop.trf.xlu0
        %v1824 = vpop.trf.xlu0
        %v1825 = vpop.trf.xlu0
        %v1826 = vpop.trf.xlu0
        %v1827 = vpop.trf.xlu0
        %v1828 = vpop.trf.xlu0
        %v1829 = vpop.trf.xlu0
        %v1830 = vpop.trf.xlu0
        %v1831 = vpop.trf.xlu0
        %v1833 = vsel %vm848, %v1816, 0
        %v1836 = vsel %vm848, %v1817, 0
        %v1839 = vsel %vm848, %v1818, 0
        %v1842 = vsel %vm848, %v1819, 0
        %v1845 = vsel %vm848, %v1820, 0
        %v1848 = vsel %vm848, %v1821, 0
        %v1851 = vsel %vm848, %v1822, 0
        %v1854 = vsel %vm848, %v1823, 0
        %v1857 = vsel %vm948, %v351, 0
        %v1859 = vsel %vm948, %v352, 0
        %1861 = vmatprep.subr.mxu0 0.0
        %1862 = vmatpush1.msra.mxu0 0.0
        %1863 = vmatprep.subr.mxu0 0.0
        %1864 = vmatpush1.msra.mxu0 0.0
        %1865 = vmatprep.subr.mxu0 0.0
        %1866 = vmatpush1.msra.mxu0 0.0
        %1867 = vmatprep.subr.mxu0 0.0
        %1868 = vmatpush1.msra.mxu0 0.0
        %1869 = vmatprep.subr.mxu0 0.0
        %1870 = vmatpush1.msra.mxu0 0.0
        %1871 = vmatprep.subr.mxu0 0.0
        %1872 = vmatpush1.msra.mxu0 0.0
        %1873 = vmatprep.subr.mxu0 0.0
        %1874 = vmatpush1.msra.mxu0 0.0
        %1875 = vmatprep.subr.mxu0 0.0
        %1876 = vmatpush1.msra.mxu0 0.0
        %1877 = vmatprep.subr.mxu0 0.0
        %1878 = vmatpush1.msra.mxu0 0.0
        %1879 = vmatprep.subr.mxu0 %v1859
        %1880 = vmatpush1.msra.mxu0 %v1857
        %1881 = vmatprep.subr.mxu0 %v350
        %1882 = vmatpush1.msra.mxu0 %v349
        %1883 = vmatprep.subr.mxu0 %v348
        %1884 = vmatpush1.msra.mxu0 %v347
        %1885 = vmatprep.subr.mxu0 %v346
        %1886 = vmatpush1.msra.mxu0 %v345
        %1887 = vmatprep.subr.mxu0 %v344
        %1888 = vmatpush1.msra.mxu0 %v343
        %1889 = vmatprep.subr.mxu0 %v342
        %1890 = vmatpush1.msra.mxu0 %v341
        %1891 = vmatprep.subr.mxu0 %v340
        %1892 = vmatpush1.msra.mxu0 %v339
        %1893 = vmatprep.subr.mxu0 0.0
        %1894 = vmatpush2.msra.mxu0 0.0
        %1895 = vmatprep.subr.mxu0 0.0
        %1896 = vmatpush2.msra.mxu0 0.0
        %1897 = vmatprep.subr.mxu0 0.0
        %1898 = vmatpush2.msra.mxu0 0.0
        %1899 = vmatprep.subr.mxu0 0.0
        %1900 = vmatpush2.msra.mxu0 0.0
        %1901 = vmatprep.subr.mxu0 0.0
        %1902 = vmatpush2.msra.mxu0 0.0
        %1903 = vmatprep.subr.mxu0 0.0
        %1904 = vmatpush2.msra.mxu0 0.0
        %1905 = vmatprep.subr.mxu0 0.0
        %1906 = vmatpush2.msra.mxu0 0.0
        %1907 = vmatprep.subr.mxu0 0.0
        %1908 = vmatpush2.msra.mxu0 0.0
        %1909 = vmatprep.subr.mxu0 0.0
        %1910 = vmatpush2.msra.mxu0 0.0
        %1911 = vmatprep.subr.mxu0 0.0
        %1912 = vmatpush2.msra.mxu0 0.0
        %1913 = vmatprep.subr.mxu0 0.0
        %1914 = vmatpush2.msra.mxu0 0.0
        %1915 = vmatprep.subr.mxu0 0.0
        %1916 = vmatpush2.msra.mxu0 0.0
        %1917 = vmatprep.subr.mxu0 0.0
        %1918 = vmatpush2.msra.mxu0 0.0
        %1919 = vmatprep.subr.mxu0 0.0
        %1920 = vmatpush2.msra.mxu0 0.0
        %1921 = vmatprep.subr.mxu0 0.0
        %1922 = vmatpush2.msra.mxu0 0.0
        %1923 = vmatprep.subr.mxu0 0.0
        %1924 = vmatpush2.msra.mxu0 0.0
        %1925 = vmatprep.mubr.f32.mxu0 0.0
        %1926 = vmatmul.mubr.f32.gmra.mxu0 %v1833
        %v1927 = vpop.f32.mrf.mxu0
        %v1928 = vadd.f32 %v369, %v1927
        %v1929 = vpop.f32.mrf.mxu0
        %v1930 = vadd.f32 %v370, %v1929
        %1931 = vmatprep.mubr.f32.mxu0 0.0
        %1932 = vmatmul.mubr.f32.gmra.mxu0 %v1836
        %v1933 = vpop.f32.mrf.mxu0
        %v1934 = vadd.f32 %v371, %v1933
        %v1935 = vpop.f32.mrf.mxu0
        %v1936 = vadd.f32 %v372, %v1935
        %1937 = vmatprep.mubr.f32.mxu0 0.0
        %1938 = vmatmul.mubr.f32.gmra.mxu0 %v1839
        %v1939 = vpop.f32.mrf.mxu0
        %v1940 = vadd.f32 %v373, %v1939
        %v1941 = vpop.f32.mrf.mxu0
        %v1942 = vadd.f32 %v374, %v1941
        %1943 = vmatprep.mubr.f32.mxu0 0.0
        %1944 = vmatmul.mubr.f32.gmra.mxu0 %v1842
        %v1945 = vpop.f32.mrf.mxu0
        %v1946 = vadd.f32 %v375, %v1945
        %v1947 = vpop.f32.mrf.mxu0
        %v1948 = vadd.f32 %v376, %v1947
        %1949 = vmatprep.mubr.f32.mxu0 0.0
        %1950 = vmatmul.mubr.f32.gmra.mxu0 %v1845
        %v1951 = vpop.f32.mrf.mxu0
        %v1952 = vadd.f32 %v377, %v1951
        %v1953 = vpop.f32.mrf.mxu0
        %v1954 = vadd.f32 %v378, %v1953
        %1955 = vmatprep.mubr.f32.mxu0 0.0
        %1956 = vmatmul.mubr.f32.gmra.mxu0 %v1848
        %v1957 = vpop.f32.mrf.mxu0
        %v1958 = vadd.f32 %v379, %v1957
        %v1959 = vpop.f32.mrf.mxu0
        %v1960 = vadd.f32 %v380, %v1959
        %1961 = vmatprep.mubr.f32.mxu0 0.0
        %1962 = vmatmul.mubr.f32.gmra.mxu0 %v1851
        %v1963 = vpop.f32.mrf.mxu0
        %v1964 = vadd.f32 %v381, %v1963
        %v1965 = vpop.f32.mrf.mxu0
        %v1966 = vadd.f32 %v382, %v1965
        %1967 = vmatprep.mubr.f32.mxu0 0.0
        %1968 = vmatmul.mubr.f32.gmra.mxu0 %v1854
        %v1969 = vpop.f32.mrf.mxu0
        %v1970 = vadd.f32 %v383, %v1969
        %v1971 = vpop.f32.mrf.mxu0
        %v1972 = vadd.f32 %v384, %v1971
        %1973 = vdwg.mxu0
        %v1974 = vxor.u32 %v1928, 2147483648
        %v1975 = vxor.u32 %v1930, 2147483648
        %v1976 = vxor.u32 %v1934, 2147483648
        %v1977 = vxor.u32 %v1936, 2147483648
        %v1978 = vxor.u32 %v1940, 2147483648
        %v1979 = vxor.u32 %v1942, 2147483648
        %v1980 = vxor.u32 %v1946, 2147483648
        %v1981 = vxor.u32 %v1948, 2147483648
        %v1982 = vxor.u32 %v1952, 2147483648
        %v1983 = vxor.u32 %v1954, 2147483648
        %v1984 = vxor.u32 %v1958, 2147483648
        %v1985 = vxor.u32 %v1960, 2147483648
        %v1986 = vxor.u32 %v1964, 2147483648
        %v1987 = vxor.u32 %v1966, 2147483648
        %v1988 = vxor.u32 %v1970, 2147483648
        %v1989 = vxor.u32 %v1972, 2147483648
        %v1990 = vmul.f32 %v1974, 1.442695
        %v1991 = vpow.pop %v1990
        %v1992 = vmul.f32 %v1975, 1.442695
        %v1993 = vpow.pop %v1992
        %v1994 = vmul.f32 %v1976, 1.442695
        %v1995 = vpow.pop %v1994
        %v1996 = vmul.f32 %v1977, 1.442695
        %v1997 = vpow.pop %v1996
        %v1998 = vmul.f32 %v1978, 1.442695
        %v1999 = vpow.pop %v1998
        %v2000 = vmul.f32 %v1979, 1.442695
        %v2001 = vpow.pop %v2000
        %v2002 = vmul.f32 %v1980, 1.442695
        %v2003 = vpow.pop %v2002
        %v2004 = vmul.f32 %v1981, 1.442695
        %v2005 = vpow.pop %v2004
        %v2006 = vmul.f32 %v1982, 1.442695
        %v2007 = vpow.pop %v2006
        %v2008 = vmul.f32 %v1983, 1.442695
        %v2009 = vpow.pop %v2008
        %v2010 = vmul.f32 %v1984, 1.442695
        %v2011 = vpow.pop %v2010
        %v2012 = vmul.f32 %v1985, 1.442695
        %v2013 = vpow.pop %v2012
        %v2014 = vmul.f32 %v1986, 1.442695
        %v2015 = vpow.pop %v2014
        %v2016 = vmul.f32 %v1987, 1.442695
        %v2017 = vpow.pop %v2016
        %v2018 = vmul.f32 %v1988, 1.442695
        %v2019 = vpow.pop %v2018
        %v2020 = vmul.f32 %v1989, 1.442695
        %v2021 = vpow.pop %v2020
        %v2022 = vadd.f32 %v1991, 1.0
        %v2023 = vadd.f32 %v1993, 1.0
        %v2024 = vadd.f32 %v1995, 1.0
        %v2025 = vadd.f32 %v1997, 1.0
        %v2026 = vadd.f32 %v1999, 1.0
        %v2027 = vadd.f32 %v2001, 1.0
        %v2028 = vadd.f32 %v2003, 1.0
        %v2029 = vadd.f32 %v2005, 1.0
        %v2030 = vadd.f32 %v2007, 1.0
        %v2031 = vadd.f32 %v2009, 1.0
        %v2032 = vadd.f32 %v2011, 1.0
        %v2033 = vadd.f32 %v2013, 1.0
        %v2034 = vadd.f32 %v2015, 1.0
        %v2035 = vadd.f32 %v2017, 1.0
        %v2036 = vadd.f32 %v2019, 1.0
        %v2037 = vadd.f32 %v2021, 1.0
        %v2038 = vrcp.pop %v2022
        %v2039 = vmul.f32 1.0, %v2038
        %v2040 = vrcp.pop %v2023
        %v2041 = vmul.f32 1.0, %v2040
        %v2042 = vrcp.pop %v2024
        %v2043 = vmul.f32 1.0, %v2042
        %v2044 = vrcp.pop %v2025
        %v2045 = vmul.f32 1.0, %v2044
        %v2046 = vrcp.pop %v2026
        %v2047 = vmul.f32 1.0, %v2046
        %v2048 = vrcp.pop %v2027
        %v2049 = vmul.f32 1.0, %v2048
        %v2050 = vrcp.pop %v2028
        %v2051 = vmul.f32 1.0, %v2050
        %v2052 = vrcp.pop %v2029
        %v2053 = vmul.f32 1.0, %v2052
        %v2054 = vrcp.pop %v2030
        %v2055 = vmul.f32 1.0, %v2054
        %v2056 = vrcp.pop %v2031
        %v2057 = vmul.f32 1.0, %v2056
        %v2058 = vrcp.pop %v2032
        %v2059 = vmul.f32 1.0, %v2058
        %v2060 = vrcp.pop %v2033
        %v2061 = vmul.f32 1.0, %v2060
        %v2062 = vrcp.pop %v2034
        %v2063 = vmul.f32 1.0, %v2062
        %v2064 = vrcp.pop %v2035
        %v2065 = vmul.f32 1.0, %v2064
        %v2066 = vrcp.pop %v2036
        %v2067 = vmul.f32 1.0, %v2066
        %v2068 = vrcp.pop %v2037
        %v2069 = vmul.f32 1.0, %v2068
        %v2070 = vmul.f32 %v369, %v2039
        %v2071 = vmul.f32 %v370, %v2041
        %v2072 = vmul.f32 %v371, %v2043
        %v2073 = vmul.f32 %v372, %v2045
        %v2074 = vmul.f32 %v373, %v2047
        %v2075 = vmul.f32 %v374, %v2049
        %v2076 = vmul.f32 %v375, %v2051
        %v2077 = vmul.f32 %v376, %v2053
        %v2078 = vmul.f32 %v377, %v2055
        %v2079 = vmul.f32 %v378, %v2057
        %v2080 = vmul.f32 %v379, %v2059
        %v2081 = vmul.f32 %v380, %v2061
        %v2082 = vmul.f32 %v381, %v2063
        %v2083 = vmul.f32 %v382, %v2065
        %v2084 = vmul.f32 %v383, %v2067
        %v2085 = vmul.f32 %v384, %v2069
        %2086 = vst [vmem:[%s338] sm:$0xff] %v2070
        %2087 = vst.msk [vmem:[%s338 + $0x8] sm:$0xff] %vm385, %v2071
        %2088 = vst [vmem:[%s338 + $0x10] sm:$0xff] %v2072
        %2089 = vst.msk [vmem:[%s338 + $0x18] sm:$0xff] %vm385, %v2073
        %2090 = vst [vmem:[%s338 + $0x20] sm:$0xff] %v2074
        %2091 = vst.msk [vmem:[%s338 + $0x28] sm:$0xff] %vm385, %v2075
        %2092 = vst [vmem:[%s338 + $0x30] sm:$0xff] %v2076
        %2093 = vst.msk [vmem:[%s338 + $0x38] sm:$0xff] %vm385, %v2077
        %2094 = vst [vmem:[%s338 + $0x40] sm:$0xff] %v2078
        %2095 = vst.msk [vmem:[%s338 + $0x48] sm:$0xff] %vm385, %v2079
        %2096 = vst [vmem:[%s338 + $0x50] sm:$0xff] %v2080
        %2097 = vst.msk [vmem:[%s338 + $0x58] sm:$0xff] %vm385, %v2081
        %2098 = vst [vmem:[%s338 + $0x60] sm:$0xff] %v2082
        %2099 = vst.msk [vmem:[%s338 + $0x68] sm:$0xff] %vm385, %v2083
        %2100 = vst [vmem:[%s338 + $0x70] sm:$0xff] %v2084
        %2101 = vst.msk [vmem:[%s338 + $0x78] sm:$0xff] %vm385, %v2085
        %s2102 = sand.u32 %s186, 1
        %s2103 = scalar_lea.sflag [#allocation4], %s2102
        %s2104 = sand.u32 %s186, 1
        %s2105 = smul.addr %s2104, 128
        %s2106 = scalar_lea.vmem [#allocation10], %s2105
        // Predicated region
        $region65: #{tpu_custom_call.1} parent=47 // pred_check
          %p2107 = pneg %p196
        $region66: #{tpu_custom_call.1} parent=47 // pred_check_branch
          %2109 = sbr.rel (%p2107) target = $region68
        $region67: #{tpu_custom_call.1} parent=47 // pred_region
          %s2111 = ssub.s32 2048, 2048
          %2112 = vsyncadd %s2103, %s2111
          %s2113 = smul.addr %s26, 16
          %s2114 = smul.addr %s2113, 128
          %s2115 = scalar_lea.hbm %s7, %s2114
          %s2116 = sshll.u32 %s2106, 4
          %s2117 = int_to_ptr.vmem [resolvable:$true] %s2116
          %2122 = dma.vmem_to_hbm [thread:$0]  %s2117, 2048, %s2115, %s2103, 256, 256, 16
        $region68: #{tpu_custom_call.1} parent=47 // pred_fallthru
          _
      $region48: #{tpu_custom_call.1} parent=5 // pred_fallthru
        _
      %p2123 = scmp.le.s32.totalorder 2, %s21
      // Predicated region
      $region69: #{tpu_custom_call.1} parent=5 // pred_check
        %p2124 = pneg %p2123
      $region70: #{tpu_custom_call.1} parent=5 // pred_check_branch
        %2126 = sbr.rel (%p2124) target = $region72
      $region71: #{tpu_custom_call.1} parent=5 // pred_region
        %s2127 = ssub.s32 %s21, 2
        // Predicated region
        $region73: #{tpu_custom_call.1} parent=71 // pred_check
          %p2128 = pneg %p202
        $region74: #{tpu_custom_call.1} parent=71 // pred_check_branch
          %2130 = sbr.rel (%p2128) target = $region76
        $region75: #{tpu_custom_call.1} parent=71 // pred_region
          %s2131 = sand.u32 %s187, 1
          %s2132 = scalar_lea.sflag [#allocation4], %s2131
          %s2133 = sand.u32 %s187, 1
          %s2134 = smul.addr %s2133, 128
          %s2135 = scalar_lea.vmem [#allocation10], %s2134
          %2136 = dma.done %s2132, 2048
        $region76: #{tpu_custom_call.1} parent=71 // pred_fallthru
          _
      $region72: #{tpu_custom_call.1} parent=5 // pred_fallthru
        _
    $region6: #{tpu_custom_call.1} parent=1 // loop_footer
      %s25 = sadd.s32 1, %s21
    $region7: #{tpu_custom_call.1} parent=1 // loop_footer_branch
      %20 = sbr.rel target = $region3
    $region8: #{tpu_custom_call.1} parent=1 // loop_exit
      _
    %2137 = vsyncpa [#allocation3], 1
    %s2138 = scalar_lea.sflag [#allocation3], 1
    %2139 = vsyncpa %s2138, 1
    %2140 = vsyncpa [#allocation6], 1
    %2141 = vsyncpa [#allocation9], 1
    %2142 = vsyncpa [#allocation4], 1
    %s2143 = scalar_lea.sflag [#allocation4], 1
    %2144 = vsyncpa %s2143, 1

</llo_original>
